<compile_context>
chip_gen: v7x
topology: tpu7x:2x2x1
jax: 0.10.0
libtpu: 0.0.40
codegen_flags: <defaults>
</compile_context>

<pallas_src>
import jax
import jax.numpy as jnp
from jax.experimental import pallas as pl
from jax.experimental.pallas import tpu as pltpu


def attention_pooling_kernel(x_ref, fill_ref, w_ref, b_ref,
                             pooled_ref, weights_ref):
    # x_ref:    (TB, Sp, Hp) VMEM, native dtype (f32 or bf16)
    # fill_ref: (TB, 1, Sp)  VMEM, f32 (0 = keep, -1e9 = masked, -1e30 = pad)
    # w_ref:    (1, 1, Hp)   VMEM, f32, resident across grid steps
    # b_ref:    (1, 1)       SMEM, f32 scalar
    x = x_ref[...]                                           # (TB, Sp, Hp)
    tb, sp, hp = x.shape
    w = jnp.broadcast_to(w_ref[...].astype(x.dtype), (tb, 1, hp))

    # scores[b, 0, s] = sum_h w[h] * x[b, s, h]  -- batched MXU matmul,
    # f32 accumulation, no f32 copy of x.
    scores = jnp.einsum('bqh,bkh->bqk', w, x,
                        preferred_element_type=jnp.float32)  # (TB, 1, Sp)
    scores = scores + b_ref[0, 0]

    # masked_fill: keep positions have fill == 0, masked positions are
    # replaced by the fill value itself (-1e9 real mask, -1e30 seq padding).
    fill = fill_ref[...]                                     # (TB, 1, Sp)
    scores = jnp.where(fill == 0.0, scores, fill)

    # Numerically stable softmax over the sequence axis.
    m = jnp.max(scores, axis=-1, keepdims=True)
    e = jnp.exp(scores - m)
    denom = jnp.sum(e, axis=-1, keepdims=True)
    weights = e * pl.reciprocal(denom, approx=False)         # (TB, 1, Sp) f32

    # pooled[b, 0, h] = sum_s weights[b, 0, s] * x[b, s, h] -- batched MXU
    # matmul over S with f32 accumulation (no (TB,S,H) f32 product temp).
    pooled = jnp.einsum('bqk,bkh->bqh', weights.astype(x.dtype), x,
                        preferred_element_type=jnp.float32)  # (TB, 1, Hp)

    pooled_ref[...] = pooled.astype(pooled_ref.dtype)
    weights_ref[...] = weights.astype(weights_ref.dtype)


def _round_up(v, m):
    return ((v + m - 1) // m) * m


def attention_pooling(encoder_outputs, mask, weight, bias,
                      *, target_x_block_bytes=4 << 20):
    """encoder_outputs: (B, S, H); mask: (B, S) (nonzero = keep);
    weight: (1, H) (nn.Linear(H, 1).weight); bias: any shape with 1 element.
    Returns (pooled (B, H), weights (B, S)), both in encoder_outputs.dtype."""
    B, S, H = encoder_outputs.shape
    x_dtype = encoder_outputs.dtype
    itemsize = jnp.dtype(x_dtype).itemsize

    # ---- Pad S / H to multiples of 128 (only when needed) for lane-dense
    # blocks and stores. Padded H columns are zero; padded S positions are
    # killed by the fill mask below.
    Sp = _round_up(S, 128)
    Hp = _round_up(H, 128)

    # ---- Generation-aware VMEM budget: <= 50% of physical VMEM
    # (32 MiB on v7x's 64 MiB part, 64 MiB on v5e/v6e's 128 MiB parts).
    try:
        vmem_cap = int(pltpu.get_tpu_info().vmem_capacity_bytes)
    except Exception:
        vmem_cap = 64 << 20
    vmem_budget = min(vmem_cap // 2, 64 << 20)

    # ---- Per-batch-row VMEM accounting (real itemsize, double-buffered
    # pipeline buffers, and the in-kernel (TB,1,Sp)/(TB,1,Hp) temporaries;
    # (·,1,·) rows pad to 8 sublanes per batch element).
    row_x = Sp * Hp * itemsize
    row_s32 = 8 * Sp * 4                       # one sublane-padded (1,Sp) f32 row
    row_bytes = (2 * row_x                     # x block, 2 pipeline buffers
                 + 2 * row_s32                 # fill block, 2 buffers
                 + 2 * 8 * Hp * itemsize       # pooled out block, 2 buffers
                 + 2 * 8 * Sp * itemsize       # weights out block, 2 buffers
                 + 8 * Hp * (itemsize + 4)     # broadcast w + f32 pooled temps
                 + 4 * row_s32)                # scores / exp / weights f32 temps
    fixed_bytes = Hp * 4 + (1 << 20)           # resident weight row + slack

    # ---- Batch tile TB: multiple of 8, bounded by the ~4 MiB x-block target
    # and by the VMEM budget; keep >= 4 grid steps when the batch allows it.
    b_pad8 = _round_up(B, 8)
    tb_target = max(8, (target_x_block_bytes // max(row_x, 1)) // 8 * 8)
    tb_budget = max(8, int((vmem_budget - fixed_bytes) // max(row_bytes, 1)) // 8 * 8)
    tb = min(tb_target, tb_budget, b_pad8)
    if b_pad8 >= 4 * 8:
        tb = min(tb, max(8, (b_pad8 // 4) // 8 * 8))
    tb = max(tb, 8)

    Bp = _round_up(B, tb)
    grid = (Bp // tb,)
    vmem_limit = int(min(max(fixed_bytes + tb * row_bytes, 16 << 20), vmem_budget))

    # ---- Pad x (zeros) and build the f32 fill mask:
    #   0      -> keep
    #   -1e9   -> masked_fill value (matches the PyTorch module)
    #   -1e30  -> padded sequence positions / padded batch rows (never win)
    x_p = encoder_outputs
    if (Bp, Sp, Hp) != (B, S, H):
        x_p = jnp.pad(x_p, ((0, Bp - B), (0, Sp - S), (0, Hp - H)))

    fill = jnp.where(mask == 0, jnp.float32(-1e9), jnp.float32(0.0))
    if (Bp, Sp) != (B, S):
        fill = jnp.pad(fill, ((0, Bp - B), (0, Sp - S)),
                       constant_values=jnp.float32(-1e30))
    fill = fill.reshape(Bp, 1, Sp)

    w3 = jnp.asarray(weight, jnp.float32)
    if Hp != H:
        w3 = jnp.pad(w3, ((0, 0), (0, Hp - H)))
    w3 = w3.reshape(1, 1, Hp)
    bias2d = jnp.asarray(bias, jnp.float32).reshape(1, 1)

    out_shapes = (
        jax.ShapeDtypeStruct((Bp, 1, Hp), x_dtype),   # pooled
        jax.ShapeDtypeStruct((Bp, 1, Sp), x_dtype),   # weights
    )

    # NOTE: on v7x a pipeline_mode=pl.Buffered(3) on the x BlockSpec is worth
    # sweeping once blocks are this small; left at the default double buffer.
    pooled3, weights3 = pl.pallas_call(
        attention_pooling_kernel,
        out_shape=out_shapes,
        grid_spec=pltpu.PrefetchScalarGridSpec(
            num_scalar_prefetch=0,
            grid=grid,
            in_specs=[
                pl.BlockSpec((tb, Sp, Hp), lambda b: (b, 0, 0)),     # x
                pl.BlockSpec((tb, 1, Sp), lambda b: (b, 0, 0)),      # fill mask
                pl.BlockSpec((1, 1, Hp), lambda b: (0, 0, 0)),       # weight
                pl.BlockSpec(memory_space=pltpu.MemorySpace.SMEM),   # bias
            ],
            out_specs=[
                pl.BlockSpec((tb, 1, Hp), lambda b: (b, 0, 0)),      # pooled
                pl.BlockSpec((tb, 1, Sp), lambda b: (b, 0, 0)),      # weights
            ],
        ),
        compiler_params=pltpu.CompilerParams(
            dimension_semantics=("parallel",),
            vmem_limit_bytes=vmem_limit),
    )(x_p, fill, w3, bias2d)

    pooled = pooled3.reshape(Bp, Hp)[:B, :H]
    weights = weights3.reshape(Bp, Sp)[:B, :S]
    return pooled, weights


def attention_pooling_ref(encoder_outputs, mask, weight, bias):
    # Pure-JAX reference mirroring the PyTorch forward.
    scores = jnp.einsum("bsh,h->bs", encoder_outputs, weight[0]) \
        + jnp.asarray(bias, jnp.float32).reshape(())
    scores = jnp.where(mask == 0, -1e9, scores)
    weights = jax.nn.softmax(scores, axis=-1)
    pooled = jnp.sum(encoder_outputs * weights[..., None], axis=1)
    return pooled, weights


if __name__ == "__main__":
    B, S, H = 2, 8, 32
    key = jax.random.PRNGKey(0)
    k_x, k_w, k_b, _ = jax.random.split(key, 4)

    encoder_outputs = jax.random.normal(k_x, (B, S, H), dtype=jnp.float32)
    # Mask: 1 = keep, 0 = pad. Deterministically zero out the tail of batch 1.
    mask = jnp.ones((B, S), dtype=jnp.float32)
    mask = mask.at[1, 5:].set(0.0)

    # nn.Linear(hidden_size, 1) parameters: weight (1, H), bias (1,) -> (1, 1).
    bound = 1.0 / float(H) ** 0.5
    weight = jax.random.uniform(k_w, (1, H), jnp.float32, -bound, bound)
    bias = jax.random.uniform(k_b, (1, 1), jnp.float32, -bound, bound)

    pooled, weights = attention_pooling(encoder_outputs, mask, weight, bias)
    jax.block_until_ready((pooled, weights))

    pooled_ref, weights_ref = attention_pooling_ref(
        encoder_outputs, mask, weight, bias)
    assert pooled.shape == (B, H) and weights.shape == (B, S)
    assert jnp.allclose(pooled, pooled_ref, atol=1e-5, rtol=1e-5)
    assert jnp.allclose(weights, weights_ref, atol=1e-5, rtol=1e-5)

    print("KERNEL_OK")
</pallas_src>

<mosaic_0001>
module attributes {stable_mosaic.version = 11 : i64} {
  func.func @attention_pooling_kernel(%arg0: i32, %arg1: memref<8x128x128xf32, #tpu.memory_space<vmem>>, %arg2: memref<8x1x128xf32, #tpu.memory_space<vmem>>, %arg3: memref<1x1x128xf32, #tpu.memory_space<vmem>>, %arg4: memref<1x1xf32, #tpu.memory_space<smem>>, %arg5: memref<8x1x128xf32, #tpu.memory_space<vmem>>, %arg6: memref<8x1x128xf32, #tpu.memory_space<vmem>>) attributes {dimension_semantics = [#tpu.dimension_semantics<parallel>], iteration_bounds = array<i64: 1>, scalar_prefetch = 0 : i64, scratch_operands = 0 : i64, tpu.core_type = #tpu.core_type<tc>, window_params = [{transform_indices = @transform_0, window_bounds = array<i64: 8, 128, 128>}, {transform_indices = @transform_1, window_bounds = array<i64: 8, 1, 128>}, {pipeline_mode = #tpu.pipeline_mode<synchronous>, transform_indices = @transform_2, window_bounds = array<i64: 1, 1, 128>}, {transform_indices = @transform_3, window_bounds = array<i64: 1, 1>}, {transform_indices = @transform_4, window_bounds = array<i64: 8, 1, 128>}, {transform_indices = @transform_5, window_bounds = array<i64: 8, 1, 128>}]} {
    %c0 = arith.constant 0 : index
    %c0_0 = arith.constant 0 : index
    %c0_1 = arith.constant 0 : index
    %0 = vector.load %arg1[%c0, %c0_0, %c0_1] : memref<8x128x128xf32, #tpu.memory_space<vmem>>, vector<8x128x128xf32>
    %c0_2 = arith.constant 0 : index
    %c0_3 = arith.constant 0 : index
    %c0_4 = arith.constant 0 : index
    %1 = vector.load %arg3[%c0_2, %c0_3, %c0_4] : memref<1x1x128xf32, #tpu.memory_space<vmem>>, vector<1x1x128xf32>
    %2 = vector.shape_cast %1 : vector<1x1x128xf32> to vector<1x1x128xf32>
    %3 = vector.broadcast %2 : vector<1x1x128xf32> to vector<8x1x128xf32>
    "tpu.trace_start"() <{level = 10 : i32, message = "bqh,bkh->bqk"}> : () -> ()
    %cst = arith.constant dense<0.000000e+00> : vector<8x1x128xf32>
    %4 = tpu.matmul %3, %0, %cst {dimension_numbers = #tpu.dot_dimension_numbers<[2], [2], [1], [1], [0, 0, 0, 1, 1, 1], [0], [0]>} : vector<8x1x128xf32>, vector<8x128x128xf32>, vector<8x1x128xf32> -> vector<8x1x128xf32>
    "tpu.trace_stop"() : () -> ()
    %c0_5 = arith.constant 0 : index
    %c0_6 = arith.constant 0 : index
    %5 = memref.load %arg4[%c0_5, %c0_6] : memref<1x1xf32, #tpu.memory_space<smem>>
    %6 = vector.broadcast %5 : f32 to vector<8x1x128xf32>
    %7 = arith.addf %4, %6 : vector<8x1x128xf32>
    %c0_7 = arith.constant 0 : index
    %c0_8 = arith.constant 0 : index
    %c0_9 = arith.constant 0 : index
    %8 = vector.load %arg2[%c0_7, %c0_8, %c0_9] : memref<8x1x128xf32, #tpu.memory_space<vmem>>, vector<8x1x128xf32>
    %cst_10 = arith.constant 0.000000e+00 : f32
    %9 = vector.broadcast %cst_10 : f32 to vector<8x1x128xf32>
    %10 = arith.cmpf oeq, %8, %9 : vector<8x1x128xf32>
    %11 = arith.select %10, %7, %8 : vector<8x1x128xi1>, vector<8x1x128xf32>
    %cst_11 = arith.constant dense<0xFF800000> : vector<8x1xf32>
    %12 = vector.multi_reduction <maximumf>, %11, %cst_11 [2] : vector<8x1x128xf32> to vector<8x1xf32>
    %13 = vector.shape_cast %12 : vector<8x1xf32> to vector<8x1x1xf32>
    %14 = vector.broadcast %13 : vector<8x1x1xf32> to vector<8x1x128xf32>
    %15 = arith.subf %11, %14 : vector<8x1x128xf32>
    %16 = math.exp %15 : vector<8x1x128xf32>
    %cst_12 = arith.constant dense<0.000000e+00> : vector<8x1xf32>
    %17 = vector.multi_reduction <add>, %16, %cst_12 [2] : vector<8x1x128xf32> to vector<8x1xf32>
    %18 = vector.shape_cast %17 : vector<8x1xf32> to vector<8x1x1xf32>
    %19 = tpu.reciprocal %18 : vector<8x1x1xf32> -> vector<8x1x1xf32>
    %20 = vector.broadcast %19 : vector<8x1x1xf32> to vector<8x1x128xf32>
    %21 = arith.mulf %16, %20 : vector<8x1x128xf32>
    "tpu.trace_start"() <{level = 10 : i32, message = "bqk,bkh->bqh"}> : () -> ()
    %cst_13 = arith.constant dense<0.000000e+00> : vector<8x1x128xf32>
    %22 = tpu.matmul %21, %0, %cst_13 {dimension_numbers = #tpu.dot_dimension_numbers<[2], [1], [1], [2], [0, 0, 0, 1, 1, 2], [0], [0]>} : vector<8x1x128xf32>, vector<8x128x128xf32>, vector<8x1x128xf32> -> vector<8x1x128xf32>
    "tpu.trace_stop"() : () -> ()
    %c0_14 = arith.constant 0 : index
    %c0_15 = arith.constant 0 : index
    %c0_16 = arith.constant 0 : index
    %23 = vector.load %arg5[%c0_14, %c0_15, %c0_16] : memref<8x1x128xf32, #tpu.memory_space<vmem>>, vector<8x1x128xf32>
    tpu.vector_store %arg5[%c0_14, %c0_15, %c0_16], %22 {strides = array<i32>} : memref<8x1x128xf32, #tpu.memory_space<vmem>>, vector<8x1x128xf32>,
    %c0_17 = arith.constant 0 : index
    %c0_18 = arith.constant 0 : index
    %c0_19 = arith.constant 0 : index
    %24 = vector.load %arg6[%c0_17, %c0_18, %c0_19] : memref<8x1x128xf32, #tpu.memory_space<vmem>>, vector<8x1x128xf32>
    tpu.vector_store %arg6[%c0_17, %c0_18, %c0_19], %21 {strides = array<i32>} : memref<8x1x128xf32, #tpu.memory_space<vmem>>, vector<8x1x128xf32>,
    return
  }
  func.func @transform_0(%arg0: i32) -> (i32, i32, i32) {
    %c0_i32 = arith.constant 0 : i32
    %c0_i32_0 = arith.constant 0 : i32
    %c0_i32_1 = arith.constant 0 : i32
    return %arg0, %c0_i32, %c0_i32_0 : i32, i32, i32
  }
  func.func @transform_1(%arg0: i32) -> (i32, i32, i32) {
    %c0_i32 = arith.constant 0 : i32
    %c0_i32_0 = arith.constant 0 : i32
    %c0_i32_1 = arith.constant 0 : i32
    return %arg0, %c0_i32, %c0_i32_0 : i32, i32, i32
  }
  func.func @transform_2(%arg0: i32) -> (i32, i32, i32) {
    %c0_i32 = arith.constant 0 : i32
    %c0_i32_0 = arith.constant 0 : i32
    %c0_i32_1 = arith.constant 0 : i32
    %c0_i32_2 = arith.constant 0 : i32
    return %c0_i32, %c0_i32_0, %c0_i32_1 : i32, i32, i32
  }
  func.func @transform_3(%arg0: i32) -> (i32, i32) {
    %c0_i32 = arith.constant 0 : i32
    %c0_i32_0 = arith.constant 0 : i32
    %c0_i32_1 = arith.constant 0 : i32
    return %c0_i32, %c0_i32_0 : i32, i32
  }
  func.func @transform_4(%arg0: i32) -> (i32, i32, i32) {
    %c0_i32 = arith.constant 0 : i32
    %c0_i32_0 = arith.constant 0 : i32
    %c0_i32_1 = arith.constant 0 : i32
    return %arg0, %c0_i32, %c0_i32_0 : i32, i32, i32
  }
  func.func @transform_5(%arg0: i32) -> (i32, i32, i32) {
    %c0_i32 = arith.constant 0 : i32
    %c0_i32_0 = arith.constant 0 : i32
    %c0_i32_1 = arith.constant 0 : i32
    return %arg0, %c0_i32, %c0_i32_0 : i32, i32, i32
  }
}

</mosaic_0001>

<llo_original>
// kernel: tpu_custom_call.1
$region0: #{tpu_custom_call.1}
  #allocation0 [shape = 'u32[]', space=smem, size = 0x4, offset = 0x4, fixed_abs, tag = 'smem constant byte address 0x4 - core index']
  #allocation1 [shape = 'u32[144,128]{1,0:T(1,128)}', space=vmem, size = 0x12000, scoped, tag = 'internal scratch']
  #allocation2 [shape = 'f32[1,1]{1,0:T(1,128)S(6)}', space=smem, size = 0x200, scoped, tag = 'scoped memory for tpu_custom_call.1']
  %s0 = inlined_call_operand.hbm [shape: f32[8,128,128], index: 0, kind: input, shape index: {}]
  %s1 = inlined_call_operand.hbm [shape: f32[8,1,128], index: 1, kind: input, shape index: {}]
  %s2 = inlined_call_operand.vmem [shape: f32[1,1,128], index: 2, kind: input, shape index: {}]
  %s3 = inlined_call_operand.<no memory space> [shape: f32[1,1], index: 3, kind: input, shape index: {}]
  %s4 = inlined_call_operand.hbm [shape: f32[8,1,128], index: 4, kind: output, shape index: {0}]
  %s5 = inlined_call_operand.hbm [shape: f32[8,1,128], index: 5, kind: output, shape index: {1}]
  %6 = xla_tuple %s4, %s5
  %s7 = sld [smem:[#allocation0]]
  $region42: #{tpu_custom_call.1} parent=0
    _
  %s9 = ssub.s32 1, %s7
  %s10 = scalar_select 0, %s9, %s7
  %11 = sst [smem:[#allocation2]] %s3
  $region1: #{tpu_custom_call.1} parent=0
    #allocation3 [shape = 'u8[524288]{0}', space=vmem, size = 0x80000, scoped, tag = 'input window, operand 0, single buffered']
    #allocation4 [shape = 's32[1]{0}', space=sflag, size = 0x4, scoped, tag = 'scoped memory for tpu_custom_call.1']
    #allocation5 [shape = 's32[1]{0}', space=sflag, size = 0x4, scoped, tag = 'scoped memory for tpu_custom_call.1']
    #allocation6 [shape = 'u8[4096]{0}', space=vmem, size = 0x1000, scoped, tag = 'input window, operand 1, single buffered']
    #allocation7 [shape = 's32[1]{0}', space=sflag, size = 0x4, scoped, tag = 'scoped memory for tpu_custom_call.1']
    #allocation8 [shape = 'u8[4096]{0}', space=vmem, size = 0x1000, scoped, tag = 'output window, operand 0, single buffered']
    #allocation9 [shape = 'u8[4096]{0}', space=vmem, size = 0x1000, scoped, tag = 'output window, operand 1, single buffered']
    #allocation10 [shape = 's32[1]{0}', space=sflag, size = 0x4, scoped, tag = 'scoped memory for tpu_custom_call.1']
    %12 = vsyncpa [#allocation4], 0
    %13 = vsyncpa [#allocation7], 0
    %14 = vsyncpa [#allocation5], 0
    %15 = vsyncpa [#allocation10], 0
    // Predicated region
    $region2: #{tpu_custom_call.1} parent=1 // pred_check
      _
    $region3: #{tpu_custom_call.1} parent=1 // pred_check_branch
      %17 = sbr.rel (0) target = $region5
    $region4: #{tpu_custom_call.1} parent=1 // pred_region
      %s19 = ssub.s32 16384, 16384
      %20 = vsyncadd [#allocation4], %s19
      %s21 = sshll.u32 [#allocation3], 4
      %s22 = int_to_ptr.vmem [resolvable:$true] %s21
      %27 = dma.hbm_to_vmem [thread:$0]  %s0, 16384, %s22, [#allocation4], 128, 128, 8
    $region5: #{tpu_custom_call.1} parent=1 // pred_fallthru
      _
    // Predicated region
    $region6: #{tpu_custom_call.1} parent=1 // pred_check
      _
    $region7: #{tpu_custom_call.1} parent=1 // pred_check_branch
      %29 = sbr.rel (0) target = $region9
    $region8: #{tpu_custom_call.1} parent=1 // pred_region
      %s31 = ssub.s32 128, 128
      %32 = vsyncadd [#allocation7], %s31
      %s33 = sshll.u32 [#allocation6], 4
      %s34 = int_to_ptr.vmem [resolvable:$true] %s33
      %39 = dma.hbm_to_vmem [thread:$0]  %s1, 128, %s34, [#allocation7], 16, 16, 1
    $region9: #{tpu_custom_call.1} parent=1 // pred_fallthru
      _
    // Predicated region
    $region10: #{tpu_custom_call.1} parent=1 // pred_check
      _
    $region11: #{tpu_custom_call.1} parent=1 // pred_check_branch
      %41 = sbr.rel (0) target = $region13
    $region12: #{tpu_custom_call.1} parent=1 // pred_region
      _
    $region13: #{tpu_custom_call.1} parent=1 // pred_fallthru
      _
    // Predicated region
    $region14: #{tpu_custom_call.1} parent=1 // pred_check
      _
    $region15: #{tpu_custom_call.1} parent=1 // pred_check_branch
      %43 = sbr.rel (0) target = $region17
    $region16: #{tpu_custom_call.1} parent=1 // pred_region
      _
    $region17: #{tpu_custom_call.1} parent=1 // pred_fallthru
      _
    // Predicated region
    $region18: #{tpu_custom_call.1} parent=1 // pred_check
      _
    $region19: #{tpu_custom_call.1} parent=1 // pred_check_branch
      %45 = sbr.rel (0) target = $region21
    $region20: #{tpu_custom_call.1} parent=1 // pred_region
      %46 = dma.done [#allocation4], 16384
    $region21: #{tpu_custom_call.1} parent=1 // pred_fallthru
      _
    // Predicated region
    $region22: #{tpu_custom_call.1} parent=1 // pred_check
      _
    $region23: #{tpu_custom_call.1} parent=1 // pred_check_branch
      %48 = sbr.rel (0) target = $region25
    $region24: #{tpu_custom_call.1} parent=1 // pred_region
      %49 = dma.done [#allocation7], 128
    $region25: #{tpu_custom_call.1} parent=1 // pred_fallthru
      _
    %v50 = vld [vmem:[#allocation3] sm:$0xff]
    %v51 = vld [vmem:[#allocation3 + $0x8] sm:$0xff]
    %v52 = vld [vmem:[#allocation3 + $0x10] sm:$0xff]
    %v53 = vld [vmem:[#allocation3 + $0x18] sm:$0xff]
    %v54 = vld [vmem:[#allocation3 + $0x20] sm:$0xff]
    %v55 = vld [vmem:[#allocation3 + $0x28] sm:$0xff]
    %v56 = vld [vmem:[#allocation3 + $0x30] sm:$0xff]
    %v57 = vld [vmem:[#allocation3 + $0x38] sm:$0xff]
    %v58 = vld [vmem:[#allocation3 + $0x40] sm:$0xff]
    %v59 = vld [vmem:[#allocation3 + $0x48] sm:$0xff]
    %v60 = vld [vmem:[#allocation3 + $0x50] sm:$0xff]
    %v61 = vld [vmem:[#allocation3 + $0x58] sm:$0xff]
    %v62 = vld [vmem:[#allocation3 + $0x60] sm:$0xff]
    %v63 = vld [vmem:[#allocation3 + $0x68] sm:$0xff]
    %v64 = vld [vmem:[#allocation3 + $0x70] sm:$0xff]
    %v65 = vld [vmem:[#allocation3 + $0x78] sm:$0xff]
    %v66 = vld [vmem:[#allocation3 + $0x80] sm:$0xff]
    %v67 = vld [vmem:[#allocation3 + $0x88] sm:$0xff]
    %v68 = vld [vmem:[#allocation3 + $0x90] sm:$0xff]
    %v69 = vld [vmem:[#allocation3 + $0x98] sm:$0xff]
    %v70 = vld [vmem:[#allocation3 + $0xa0] sm:$0xff]
    %v71 = vld [vmem:[#allocation3 + $0xa8] sm:$0xff]
    %v72 = vld [vmem:[#allocation3 + $0xb0] sm:$0xff]
    %v73 = vld [vmem:[#allocation3 + $0xb8] sm:$0xff]
    %v74 = vld [vmem:[#allocation3 + $0xc0] sm:$0xff]
    %v75 = vld [vmem:[#allocation3 + $0xc8] sm:$0xff]
    %v76 = vld [vmem:[#allocation3 + $0xd0] sm:$0xff]
    %v77 = vld [vmem:[#allocation3 + $0xd8] sm:$0xff]
    %v78 = vld [vmem:[#allocation3 + $0xe0] sm:$0xff]
    %v79 = vld [vmem:[#allocation3 + $0xe8] sm:$0xff]
    %v80 = vld [vmem:[#allocation3 + $0xf0] sm:$0xff]
    %v81 = vld [vmem:[#allocation3 + $0xf8] sm:$0xff]
    %v82 = vld [vmem:[#allocation3 + $0x100] sm:$0xff]
    %v83 = vld [vmem:[#allocation3 + $0x108] sm:$0xff]
    %v84 = vld [vmem:[#allocation3 + $0x110] sm:$0xff]
    %v85 = vld [vmem:[#allocation3 + $0x118] sm:$0xff]
    %v86 = vld [vmem:[#allocation3 + $0x120] sm:$0xff]
    %v87 = vld [vmem:[#allocation3 + $0x128] sm:$0xff]
    %v88 = vld [vmem:[#allocation3 + $0x130] sm:$0xff]
    %v89 = vld [vmem:[#allocation3 + $0x138] sm:$0xff]
    %v90 = vld [vmem:[#allocation3 + $0x140] sm:$0xff]
    %v91 = vld [vmem:[#allocation3 + $0x148] sm:$0xff]
    %v92 = vld [vmem:[#allocation3 + $0x150] sm:$0xff]
    %v93 = vld [vmem:[#allocation3 + $0x158] sm:$0xff]
    %v94 = vld [vmem:[#allocation3 + $0x160] sm:$0xff]
    %v95 = vld [vmem:[#allocation3 + $0x168] sm:$0xff]
    %v96 = vld [vmem:[#allocation3 + $0x170] sm:$0xff]
    %v97 = vld [vmem:[#allocation3 + $0x178] sm:$0xff]
    %v98 = vld [vmem:[#allocation3 + $0x180] sm:$0xff]
    %v99 = vld [vmem:[#allocation3 + $0x188] sm:$0xff]
    %v100 = vld [vmem:[#allocation3 + $0x190] sm:$0xff]
    %v101 = vld [vmem:[#allocation3 + $0x198] sm:$0xff]
    %v102 = vld [vmem:[#allocation3 + $0x1a0] sm:$0xff]
    %v103 = vld [vmem:[#allocation3 + $0x1a8] sm:$0xff]
    %v104 = vld [vmem:[#allocation3 + $0x1b0] sm:$0xff]
    %v105 = vld [vmem:[#allocation3 + $0x1b8] sm:$0xff]
    %v106 = vld [vmem:[#allocation3 + $0x1c0] sm:$0xff]
    %v107 = vld [vmem:[#allocation3 + $0x1c8] sm:$0xff]
    %v108 = vld [vmem:[#allocation3 + $0x1d0] sm:$0xff]
    %v109 = vld [vmem:[#allocation3 + $0x1d8] sm:$0xff]
    %v110 = vld [vmem:[#allocation3 + $0x1e0] sm:$0xff]
    %v111 = vld [vmem:[#allocation3 + $0x1e8] sm:$0xff]
    %v112 = vld [vmem:[#allocation3 + $0x1f0] sm:$0xff]
    %v113 = vld [vmem:[#allocation3 + $0x1f8] sm:$0xff]
    %v114 = vld [vmem:[#allocation3 + $0x200] sm:$0xff]
    %v115 = vld [vmem:[#allocation3 + $0x208] sm:$0xff]
    %v116 = vld [vmem:[#allocation3 + $0x210] sm:$0xff]
    %v117 = vld [vmem:[#allocation3 + $0x218] sm:$0xff]
    %v118 = vld [vmem:[#allocation3 + $0x220] sm:$0xff]
    %v119 = vld [vmem:[#allocation3 + $0x228] sm:$0xff]
    %v120 = vld [vmem:[#allocation3 + $0x230] sm:$0xff]
    %v121 = vld [vmem:[#allocation3 + $0x238] sm:$0xff]
    %v122 = vld [vmem:[#allocation3 + $0x240] sm:$0xff]
    %v123 = vld [vmem:[#allocation3 + $0x248] sm:$0xff]
    %v124 = vld [vmem:[#allocation3 + $0x250] sm:$0xff]
    %v125 = vld [vmem:[#allocation3 + $0x258] sm:$0xff]
    %v126 = vld [vmem:[#allocation3 + $0x260] sm:$0xff]
    %v127 = vld [vmem:[#allocation3 + $0x268] sm:$0xff]
    %v128 = vld [vmem:[#allocation3 + $0x270] sm:$0xff]
    %v129 = vld [vmem:[#allocation3 + $0x278] sm:$0xff]
    %v130 = vld [vmem:[#allocation3 + $0x280] sm:$0xff]
    %v131 = vld [vmem:[#allocation3 + $0x288] sm:$0xff]
    %v132 = vld [vmem:[#allocation3 + $0x290] sm:$0xff]
    %v133 = vld [vmem:[#allocation3 + $0x298] sm:$0xff]
    %v134 = vld [vmem:[#allocation3 + $0x2a0] sm:$0xff]
    %v135 = vld [vmem:[#allocation3 + $0x2a8] sm:$0xff]
    %v136 = vld [vmem:[#allocation3 + $0x2b0] sm:$0xff]
    %v137 = vld [vmem:[#allocation3 + $0x2b8] sm:$0xff]
    %v138 = vld [vmem:[#allocation3 + $0x2c0] sm:$0xff]
    %v139 = vld [vmem:[#allocation3 + $0x2c8] sm:$0xff]
    %v140 = vld [vmem:[#allocation3 + $0x2d0] sm:$0xff]
    %v141 = vld [vmem:[#allocation3 + $0x2d8] sm:$0xff]
    %v142 = vld [vmem:[#allocation3 + $0x2e0] sm:$0xff]
    %v143 = vld [vmem:[#allocation3 + $0x2e8] sm:$0xff]
    %v144 = vld [vmem:[#allocation3 + $0x2f0] sm:$0xff]
    %v145 = vld [vmem:[#allocation3 + $0x2f8] sm:$0xff]
    %v146 = vld [vmem:[#allocation3 + $0x300] sm:$0xff]
    %v147 = vld [vmem:[#allocation3 + $0x308] sm:$0xff]
    %v148 = vld [vmem:[#allocation3 + $0x310] sm:$0xff]
    %v149 = vld [vmem:[#allocation3 + $0x318] sm:$0xff]
    %v150 = vld [vmem:[#allocation3 + $0x320] sm:$0xff]
    %v151 = vld [vmem:[#allocation3 + $0x328] sm:$0xff]
    %v152 = vld [vmem:[#allocation3 + $0x330] sm:$0xff]
    %v153 = vld [vmem:[#allocation3 + $0x338] sm:$0xff]
    %v154 = vld [vmem:[#allocation3 + $0x340] sm:$0xff]
    %v155 = vld [vmem:[#allocation3 + $0x348] sm:$0xff]
    %v156 = vld [vmem:[#allocation3 + $0x350] sm:$0xff]
    %v157 = vld [vmem:[#allocation3 + $0x358] sm:$0xff]
    %v158 = vld [vmem:[#allocation3 + $0x360] sm:$0xff]
    %v159 = vld [vmem:[#allocation3 + $0x368] sm:$0xff]
    %v160 = vld [vmem:[#allocation3 + $0x370] sm:$0xff]
    %v161 = vld [vmem:[#allocation3 + $0x378] sm:$0xff]
    %v162 = vld [vmem:[#allocation3 + $0x380] sm:$0xff]
    %v163 = vld [vmem:[#allocation3 + $0x388] sm:$0xff]
    %v164 = vld [vmem:[#allocation3 + $0x390] sm:$0xff]
    %v165 = vld [vmem:[#allocation3 + $0x398] sm:$0xff]
    %v166 = vld [vmem:[#allocation3 + $0x3a0] sm:$0xff]
    %v167 = vld [vmem:[#allocation3 + $0x3a8] sm:$0xff]
    %v168 = vld [vmem:[#allocation3 + $0x3b0] sm:$0xff]
    %v169 = vld [vmem:[#allocation3 + $0x3b8] sm:$0xff]
    %v170 = vld [vmem:[#allocation3 + $0x3c0] sm:$0xff]
    %v171 = vld [vmem:[#allocation3 + $0x3c8] sm:$0xff]
    %v172 = vld [vmem:[#allocation3 + $0x3d0] sm:$0xff]
    %v173 = vld [vmem:[#allocation3 + $0x3d8] sm:$0xff]
    %v174 = vld [vmem:[#allocation3 + $0x3e0] sm:$0xff]
    %v175 = vld [vmem:[#allocation3 + $0x3e8] sm:$0xff]
    %v176 = vld [vmem:[#allocation3 + $0x3f0] sm:$0xff]
    %v177 = vld [vmem:[#allocation3 + $0x3f8] sm:$0xff]
    %v178 = vld [vmem:[%s2] sm:$0x1]
    %s179 = sld [smem:[#allocation2]]
    %v180 = vstv %s179
    %181 = vmatprep.subr.mxu0 0.0
    %182 = vmatpush1.xpose.msra.mxu0 %v50
    %183 = vmatprep.subr.mxu0 0.0
    %184 = vmatpush1.xpose.msra.mxu0 %v51
    %185 = vmatprep.subr.mxu0 0.0
    %186 = vmatpush1.xpose.msra.mxu0 %v52
    %187 = vmatprep.subr.mxu0 0.0
    %188 = vmatpush1.xpose.msra.mxu0 %v53
    %189 = vmatprep.subr.mxu0 0.0
    %190 = vmatpush1.xpose.msra.mxu0 %v54
    %191 = vmatprep.subr.mxu0 0.0
    %192 = vmatpush1.xpose.msra.mxu0 %v55
    %193 = vmatprep.subr.mxu0 0.0
    %194 = vmatpush1.xpose.msra.mxu0 %v56
    %195 = vmatprep.subr.mxu0 0.0
    %196 = vmatpush1.xpose.msra.mxu0 %v57
    %197 = vmatprep.subr.mxu0 0.0
    %198 = vmatpush1.xpose.msra.mxu0 %v58
    %199 = vmatprep.subr.mxu0 0.0
    %200 = vmatpush1.xpose.msra.mxu0 %v59
    %201 = vmatprep.subr.mxu0 0.0
    %202 = vmatpush1.xpose.msra.mxu0 %v60
    %203 = vmatprep.subr.mxu0 0.0
    %204 = vmatpush1.xpose.msra.mxu0 %v61
    %205 = vmatprep.subr.mxu0 0.0
    %206 = vmatpush1.xpose.msra.mxu0 %v62
    %207 = vmatprep.subr.mxu0 0.0
    %208 = vmatpush1.xpose.msra.mxu0 %v63
    %209 = vmatprep.subr.mxu0 0.0
    %210 = vmatpush1.xpose.msra.mxu0 %v64
    %211 = vmatprep.subr.mxu0 0.0
    %212 = vmatpush1.xpose.msra.mxu0 %v65
    %213 = vmatprep.subr.mxu0 0.0
    %214 = vmatpush1.xpose.msra.mxu0 0.0
    %215 = vmatprep.subr.mxu0 0.0
    %216 = vmatpush1.xpose.msra.mxu0 0.0
    %217 = vmatprep.subr.mxu0 0.0
    %218 = vmatpush1.xpose.msra.mxu0 0.0
    %219 = vmatprep.subr.mxu0 0.0
    %220 = vmatpush1.xpose.msra.mxu0 0.0
    %221 = vmatprep.subr.mxu0 0.0
    %222 = vmatpush1.xpose.msra.mxu0 0.0
    %223 = vmatprep.subr.mxu0 0.0
    %224 = vmatpush1.xpose.msra.mxu0 0.0
    %225 = vmatprep.subr.mxu0 0.0
    %226 = vmatpush1.xpose.msra.mxu0 0.0
    %227 = vmatprep.subr.mxu0 0.0
    %228 = vmatpush1.xpose.msra.mxu0 0.0
    %229 = vmatprep.subr.mxu0 0.0
    %230 = vmatpush1.xpose.msra.mxu0 0.0
    %231 = vmatprep.subr.mxu0 0.0
    %232 = vmatpush1.xpose.msra.mxu0 0.0
    %233 = vmatprep.subr.mxu0 0.0
    %234 = vmatpush1.xpose.msra.mxu0 0.0
    %235 = vmatprep.subr.mxu0 0.0
    %236 = vmatpush1.xpose.msra.mxu0 0.0
    %237 = vmatprep.subr.mxu0 0.0
    %238 = vmatpush1.xpose.msra.mxu0 0.0
    %239 = vmatprep.subr.mxu0 0.0
    %240 = vmatpush1.xpose.msra.mxu0 0.0
    %241 = vmatprep.subr.mxu0 0.0
    %242 = vmatpush1.xpose.msra.mxu0 0.0
    %243 = vmatprep.subr.mxu0 0.0
    %244 = vmatpush1.xpose.msra.mxu0 0.0
    %245 = vmatprep.mubr.f32.mxu0 0.0
    %246 = vmatmul.mubr.f32.gmra.mrb[0].mxu0 %v178
    %v247 = vpop.f32.mrb[0].mxu0
    %v248 = vadd.f32 %v180, %v247
    %v249 = vpop.f32.mrb[0].mxu0
    %250 = vdwg.mxu0
    %251 = vmatprep.subr.mxu0 0.0
    %252 = vmatpush1.xpose.msra.mxu0 %v66
    %253 = vmatprep.subr.mxu0 0.0
    %254 = vmatpush1.xpose.msra.mxu0 %v67
    %255 = vmatprep.subr.mxu0 0.0
    %256 = vmatpush1.xpose.msra.mxu0 %v68
    %257 = vmatprep.subr.mxu0 0.0
    %258 = vmatpush1.xpose.msra.mxu0 %v69
    %259 = vmatprep.subr.mxu0 0.0
    %260 = vmatpush1.xpose.msra.mxu0 %v70
    %261 = vmatprep.subr.mxu0 0.0
    %262 = vmatpush1.xpose.msra.mxu0 %v71
    %263 = vmatprep.subr.mxu0 0.0
    %264 = vmatpush1.xpose.msra.mxu0 %v72
    %265 = vmatprep.subr.mxu0 0.0
    %266 = vmatpush1.xpose.msra.mxu0 %v73
    %267 = vmatprep.subr.mxu0 0.0
    %268 = vmatpush1.xpose.msra.mxu0 %v74
    %269 = vmatprep.subr.mxu0 0.0
    %270 = vmatpush1.xpose.msra.mxu0 %v75
    %271 = vmatprep.subr.mxu0 0.0
    %272 = vmatpush1.xpose.msra.mxu0 %v76
    %273 = vmatprep.subr.mxu0 0.0
    %274 = vmatpush1.xpose.msra.mxu0 %v77
    %275 = vmatprep.subr.mxu0 0.0
    %276 = vmatpush1.xpose.msra.mxu0 %v78
    %277 = vmatprep.subr.mxu0 0.0
    %278 = vmatpush1.xpose.msra.mxu0 %v79
    %279 = vmatprep.subr.mxu0 0.0
    %280 = vmatpush1.xpose.msra.mxu0 %v80
    %281 = vmatprep.subr.mxu0 0.0
    %282 = vmatpush1.xpose.msra.mxu0 %v81
    %283 = vmatprep.subr.mxu0 0.0
    %284 = vmatpush1.xpose.msra.mxu0 0.0
    %285 = vmatprep.subr.mxu0 0.0
    %286 = vmatpush1.xpose.msra.mxu0 0.0
    %287 = vmatprep.subr.mxu0 0.0
    %288 = vmatpush1.xpose.msra.mxu0 0.0
    %289 = vmatprep.subr.mxu0 0.0
    %290 = vmatpush1.xpose.msra.mxu0 0.0
    %291 = vmatprep.subr.mxu0 0.0
    %292 = vmatpush1.xpose.msra.mxu0 0.0
    %293 = vmatprep.subr.mxu0 0.0
    %294 = vmatpush1.xpose.msra.mxu0 0.0
    %295 = vmatprep.subr.mxu0 0.0
    %296 = vmatpush1.xpose.msra.mxu0 0.0
    %297 = vmatprep.subr.mxu0 0.0
    %298 = vmatpush1.xpose.msra.mxu0 0.0
    %299 = vmatprep.subr.mxu0 0.0
    %300 = vmatpush1.xpose.msra.mxu0 0.0
    %301 = vmatprep.subr.mxu0 0.0
    %302 = vmatpush1.xpose.msra.mxu0 0.0
    %303 = vmatprep.subr.mxu0 0.0
    %304 = vmatpush1.xpose.msra.mxu0 0.0
    %305 = vmatprep.subr.mxu0 0.0
    %306 = vmatpush1.xpose.msra.mxu0 0.0
    %307 = vmatprep.subr.mxu0 0.0
    %308 = vmatpush1.xpose.msra.mxu0 0.0
    %309 = vmatprep.subr.mxu0 0.0
    %310 = vmatpush1.xpose.msra.mxu0 0.0
    %311 = vmatprep.subr.mxu0 0.0
    %312 = vmatpush1.xpose.msra.mxu0 0.0
    %313 = vmatprep.subr.mxu0 0.0
    %314 = vmatpush1.xpose.msra.mxu0 0.0
    %315 = vmatprep.mubr.f32.mxu0 0.0
    %316 = vmatmul.mubr.f32.gmra.mrb[0].mxu0 %v178
    %v317 = vpop.f32.mrb[0].mxu0
    %v318 = vadd.f32 %v180, %v317
    %v319 = vpop.f32.mrb[0].mxu0
    %320 = vdwg.mxu0
    %321 = vmatprep.subr.mxu0 0.0
    %322 = vmatpush1.xpose.msra.mxu0 %v82
    %323 = vmatprep.subr.mxu0 0.0
    %324 = vmatpush1.xpose.msra.mxu0 %v83
    %325 = vmatprep.subr.mxu0 0.0
    %326 = vmatpush1.xpose.msra.mxu0 %v84
    %327 = vmatprep.subr.mxu0 0.0
    %328 = vmatpush1.xpose.msra.mxu0 %v85
    %329 = vmatprep.subr.mxu0 0.0
    %330 = vmatpush1.xpose.msra.mxu0 %v86
    %331 = vmatprep.subr.mxu0 0.0
    %332 = vmatpush1.xpose.msra.mxu0 %v87
    %333 = vmatprep.subr.mxu0 0.0
    %334 = vmatpush1.xpose.msra.mxu0 %v88
    %335 = vmatprep.subr.mxu0 0.0
    %336 = vmatpush1.xpose.msra.mxu0 %v89
    %337 = vmatprep.subr.mxu0 0.0
    %338 = vmatpush1.xpose.msra.mxu0 %v90
    %339 = vmatprep.subr.mxu0 0.0
    %340 = vmatpush1.xpose.msra.mxu0 %v91
    %341 = vmatprep.subr.mxu0 0.0
    %342 = vmatpush1.xpose.msra.mxu0 %v92
    %343 = vmatprep.subr.mxu0 0.0
    %344 = vmatpush1.xpose.msra.mxu0 %v93
    %345 = vmatprep.subr.mxu0 0.0
    %346 = vmatpush1.xpose.msra.mxu0 %v94
    %347 = vmatprep.subr.mxu0 0.0
    %348 = vmatpush1.xpose.msra.mxu0 %v95
    %349 = vmatprep.subr.mxu0 0.0
    %350 = vmatpush1.xpose.msra.mxu0 %v96
    %351 = vmatprep.subr.mxu0 0.0
    %352 = vmatpush1.xpose.msra.mxu0 %v97
    %353 = vmatprep.subr.mxu0 0.0
    %354 = vmatpush1.xpose.msra.mxu0 0.0
    %355 = vmatprep.subr.mxu0 0.0
    %356 = vmatpush1.xpose.msra.mxu0 0.0
    %357 = vmatprep.subr.mxu0 0.0
    %358 = vmatpush1.xpose.msra.mxu0 0.0
    %359 = vmatprep.subr.mxu0 0.0
    %360 = vmatpush1.xpose.msra.mxu0 0.0
    %361 = vmatprep.subr.mxu0 0.0
    %362 = vmatpush1.xpose.msra.mxu0 0.0
    %363 = vmatprep.subr.mxu0 0.0
    %364 = vmatpush1.xpose.msra.mxu0 0.0
    %365 = vmatprep.subr.mxu0 0.0
    %366 = vmatpush1.xpose.msra.mxu0 0.0
    %367 = vmatprep.subr.mxu0 0.0
    %368 = vmatpush1.xpose.msra.mxu0 0.0
    %369 = vmatprep.subr.mxu0 0.0
    %370 = vmatpush1.xpose.msra.mxu0 0.0
    %371 = vmatprep.subr.mxu0 0.0
    %372 = vmatpush1.xpose.msra.mxu0 0.0
    %373 = vmatprep.subr.mxu0 0.0
    %374 = vmatpush1.xpose.msra.mxu0 0.0
    %375 = vmatprep.subr.mxu0 0.0
    %376 = vmatpush1.xpose.msra.mxu0 0.0
    %377 = vmatprep.subr.mxu0 0.0
    %378 = vmatpush1.xpose.msra.mxu0 0.0
    %379 = vmatprep.subr.mxu0 0.0
    %380 = vmatpush1.xpose.msra.mxu0 0.0
    %381 = vmatprep.subr.mxu0 0.0
    %382 = vmatpush1.xpose.msra.mxu0 0.0
    %383 = vmatprep.subr.mxu0 0.0
    %384 = vmatpush1.xpose.msra.mxu0 0.0
    %385 = vmatprep.mubr.f32.mxu0 0.0
    %386 = vmatmul.mubr.f32.gmra.mrb[0].mxu0 %v178
    %v387 = vpop.f32.mrb[0].mxu0
    %v388 = vadd.f32 %v180, %v387
    %v389 = vpop.f32.mrb[0].mxu0
    %390 = vdwg.mxu0
    %391 = vmatprep.subr.mxu0 0.0
    %392 = vmatpush1.xpose.msra.mxu0 %v98
    %393 = vmatprep.subr.mxu0 0.0
    %394 = vmatpush1.xpose.msra.mxu0 %v99
    %395 = vmatprep.subr.mxu0 0.0
    %396 = vmatpush1.xpose.msra.mxu0 %v100
    %397 = vmatprep.subr.mxu0 0.0
    %398 = vmatpush1.xpose.msra.mxu0 %v101
    %399 = vmatprep.subr.mxu0 0.0
    %400 = vmatpush1.xpose.msra.mxu0 %v102
    %401 = vmatprep.subr.mxu0 0.0
    %402 = vmatpush1.xpose.msra.mxu0 %v103
    %403 = vmatprep.subr.mxu0 0.0
    %404 = vmatpush1.xpose.msra.mxu0 %v104
    %405 = vmatprep.subr.mxu0 0.0
    %406 = vmatpush1.xpose.msra.mxu0 %v105
    %407 = vmatprep.subr.mxu0 0.0
    %408 = vmatpush1.xpose.msra.mxu0 %v106
    %409 = vmatprep.subr.mxu0 0.0
    %410 = vmatpush1.xpose.msra.mxu0 %v107
    %411 = vmatprep.subr.mxu0 0.0
    %412 = vmatpush1.xpose.msra.mxu0 %v108
    %413 = vmatprep.subr.mxu0 0.0
    %414 = vmatpush1.xpose.msra.mxu0 %v109
    %415 = vmatprep.subr.mxu0 0.0
    %416 = vmatpush1.xpose.msra.mxu0 %v110
    %417 = vmatprep.subr.mxu0 0.0
    %418 = vmatpush1.xpose.msra.mxu0 %v111
    %419 = vmatprep.subr.mxu0 0.0
    %420 = vmatpush1.xpose.msra.mxu0 %v112
    %421 = vmatprep.subr.mxu0 0.0
    %422 = vmatpush1.xpose.msra.mxu0 %v113
    %423 = vmatprep.subr.mxu0 0.0
    %424 = vmatpush1.xpose.msra.mxu0 0.0
    %425 = vmatprep.subr.mxu0 0.0
    %426 = vmatpush1.xpose.msra.mxu0 0.0
    %427 = vmatprep.subr.mxu0 0.0
    %428 = vmatpush1.xpose.msra.mxu0 0.0
    %429 = vmatprep.subr.mxu0 0.0
    %430 = vmatpush1.xpose.msra.mxu0 0.0
    %431 = vmatprep.subr.mxu0 0.0
    %432 = vmatpush1.xpose.msra.mxu0 0.0
    %433 = vmatprep.subr.mxu0 0.0
    %434 = vmatpush1.xpose.msra.mxu0 0.0
    %435 = vmatprep.subr.mxu0 0.0
    %436 = vmatpush1.xpose.msra.mxu0 0.0
    %437 = vmatprep.subr.mxu0 0.0
    %438 = vmatpush1.xpose.msra.mxu0 0.0
    %439 = vmatprep.subr.mxu0 0.0
    %440 = vmatpush1.xpose.msra.mxu0 0.0
    %441 = vmatprep.subr.mxu0 0.0
    %442 = vmatpush1.xpose.msra.mxu0 0.0
    %443 = vmatprep.subr.mxu0 0.0
    %444 = vmatpush1.xpose.msra.mxu0 0.0
    %445 = vmatprep.subr.mxu0 0.0
    %446 = vmatpush1.xpose.msra.mxu0 0.0
    %447 = vmatprep.subr.mxu0 0.0
    %448 = vmatpush1.xpose.msra.mxu0 0.0
    %449 = vmatprep.subr.mxu0 0.0
    %450 = vmatpush1.xpose.msra.mxu0 0.0
    %451 = vmatprep.subr.mxu0 0.0
    %452 = vmatpush1.xpose.msra.mxu0 0.0
    %453 = vmatprep.subr.mxu0 0.0
    %454 = vmatpush1.xpose.msra.mxu0 0.0
    %455 = vmatprep.mubr.f32.mxu0 0.0
    %456 = vmatmul.mubr.f32.gmra.mrb[0].mxu0 %v178
    %v457 = vpop.f32.mrb[0].mxu0
    %v458 = vadd.f32 %v180, %v457
    %v459 = vpop.f32.mrb[0].mxu0
    %460 = vdwg.mxu0
    %461 = vmatprep.subr.mxu0 0.0
    %462 = vmatpush1.xpose.msra.mxu0 %v114
    %463 = vmatprep.subr.mxu0 0.0
    %464 = vmatpush1.xpose.msra.mxu0 %v115
    %465 = vmatprep.subr.mxu0 0.0
    %466 = vmatpush1.xpose.msra.mxu0 %v116
    %467 = vmatprep.subr.mxu0 0.0
    %468 = vmatpush1.xpose.msra.mxu0 %v117
    %469 = vmatprep.subr.mxu0 0.0
    %470 = vmatpush1.xpose.msra.mxu0 %v118
    %471 = vmatprep.subr.mxu0 0.0
    %472 = vmatpush1.xpose.msra.mxu0 %v119
    %473 = vmatprep.subr.mxu0 0.0
    %474 = vmatpush1.xpose.msra.mxu0 %v120
    %475 = vmatprep.subr.mxu0 0.0
    %476 = vmatpush1.xpose.msra.mxu0 %v121
    %477 = vmatprep.subr.mxu0 0.0
    %478 = vmatpush1.xpose.msra.mxu0 %v122
    %479 = vmatprep.subr.mxu0 0.0
    %480 = vmatpush1.xpose.msra.mxu0 %v123
    %481 = vmatprep.subr.mxu0 0.0
    %482 = vmatpush1.xpose.msra.mxu0 %v124
    %483 = vmatprep.subr.mxu0 0.0
    %484 = vmatpush1.xpose.msra.mxu0 %v125
    %485 = vmatprep.subr.mxu0 0.0
    %486 = vmatpush1.xpose.msra.mxu0 %v126
    %487 = vmatprep.subr.mxu0 0.0
    %488 = vmatpush1.xpose.msra.mxu0 %v127
    %489 = vmatprep.subr.mxu0 0.0
    %490 = vmatpush1.xpose.msra.mxu0 %v128
    %491 = vmatprep.subr.mxu0 0.0
    %492 = vmatpush1.xpose.msra.mxu0 %v129
    %493 = vmatprep.subr.mxu0 0.0
    %494 = vmatpush1.xpose.msra.mxu0 0.0
    %495 = vmatprep.subr.mxu0 0.0
    %496 = vmatpush1.xpose.msra.mxu0 0.0
    %497 = vmatprep.subr.mxu0 0.0
    %498 = vmatpush1.xpose.msra.mxu0 0.0
    %499 = vmatprep.subr.mxu0 0.0
    %500 = vmatpush1.xpose.msra.mxu0 0.0
    %501 = vmatprep.subr.mxu0 0.0
    %502 = vmatpush1.xpose.msra.mxu0 0.0
    %503 = vmatprep.subr.mxu0 0.0
    %504 = vmatpush1.xpose.msra.mxu0 0.0
    %505 = vmatprep.subr.mxu0 0.0
    %506 = vmatpush1.xpose.msra.mxu0 0.0
    %507 = vmatprep.subr.mxu0 0.0
    %508 = vmatpush1.xpose.msra.mxu0 0.0
    %509 = vmatprep.subr.mxu0 0.0
    %510 = vmatpush1.xpose.msra.mxu0 0.0
    %511 = vmatprep.subr.mxu0 0.0
    %512 = vmatpush1.xpose.msra.mxu0 0.0
    %513 = vmatprep.subr.mxu0 0.0
    %514 = vmatpush1.xpose.msra.mxu0 0.0
    %515 = vmatprep.subr.mxu0 0.0
    %516 = vmatpush1.xpose.msra.mxu0 0.0
    %517 = vmatprep.subr.mxu0 0.0
    %518 = vmatpush1.xpose.msra.mxu0 0.0
    %519 = vmatprep.subr.mxu0 0.0
    %520 = vmatpush1.xpose.msra.mxu0 0.0
    %521 = vmatprep.subr.mxu0 0.0
    %522 = vmatpush1.xpose.msra.mxu0 0.0
    %523 = vmatprep.subr.mxu0 0.0
    %524 = vmatpush1.xpose.msra.mxu0 0.0
    %525 = vmatprep.mubr.f32.mxu0 0.0
    %526 = vmatmul.mubr.f32.gmra.mrb[0].mxu0 %v178
    %v527 = vpop.f32.mrb[0].mxu0
    %v528 = vadd.f32 %v180, %v527
    %v529 = vpop.f32.mrb[0].mxu0
    %530 = vdwg.mxu0
    %531 = vmatprep.subr.mxu0 0.0
    %532 = vmatpush1.xpose.msra.mxu0 %v130
    %533 = vmatprep.subr.mxu0 0.0
    %534 = vmatpush1.xpose.msra.mxu0 %v131
    %535 = vmatprep.subr.mxu0 0.0
    %536 = vmatpush1.xpose.msra.mxu0 %v132
    %537 = vmatprep.subr.mxu0 0.0
    %538 = vmatpush1.xpose.msra.mxu0 %v133
    %539 = vmatprep.subr.mxu0 0.0
    %540 = vmatpush1.xpose.msra.mxu0 %v134
    %541 = vmatprep.subr.mxu0 0.0
    %542 = vmatpush1.xpose.msra.mxu0 %v135
    %543 = vmatprep.subr.mxu0 0.0
    %544 = vmatpush1.xpose.msra.mxu0 %v136
    %545 = vmatprep.subr.mxu0 0.0
    %546 = vmatpush1.xpose.msra.mxu0 %v137
    %547 = vmatprep.subr.mxu0 0.0
    %548 = vmatpush1.xpose.msra.mxu0 %v138
    %549 = vmatprep.subr.mxu0 0.0
    %550 = vmatpush1.xpose.msra.mxu0 %v139
    %551 = vmatprep.subr.mxu0 0.0
    %552 = vmatpush1.xpose.msra.mxu0 %v140
    %553 = vmatprep.subr.mxu0 0.0
    %554 = vmatpush1.xpose.msra.mxu0 %v141
    %555 = vmatprep.subr.mxu0 0.0
    %556 = vmatpush1.xpose.msra.mxu0 %v142
    %557 = vmatprep.subr.mxu0 0.0
    %558 = vmatpush1.xpose.msra.mxu0 %v143
    %559 = vmatprep.subr.mxu0 0.0
    %560 = vmatpush1.xpose.msra.mxu0 %v144
    %561 = vmatprep.subr.mxu0 0.0
    %562 = vmatpush1.xpose.msra.mxu0 %v145
    %563 = vmatprep.subr.mxu0 0.0
    %564 = vmatpush1.xpose.msra.mxu0 0.0
    %565 = vmatprep.subr.mxu0 0.0
    %566 = vmatpush1.xpose.msra.mxu0 0.0
    %567 = vmatprep.subr.mxu0 0.0
    %568 = vmatpush1.xpose.msra.mxu0 0.0
    %569 = vmatprep.subr.mxu0 0.0
    %570 = vmatpush1.xpose.msra.mxu0 0.0
    %571 = vmatprep.subr.mxu0 0.0
    %572 = vmatpush1.xpose.msra.mxu0 0.0
    %573 = vmatprep.subr.mxu0 0.0
    %574 = vmatpush1.xpose.msra.mxu0 0.0
    %575 = vmatprep.subr.mxu0 0.0
    %576 = vmatpush1.xpose.msra.mxu0 0.0
    %577 = vmatprep.subr.mxu0 0.0
    %578 = vmatpush1.xpose.msra.mxu0 0.0
    %579 = vmatprep.subr.mxu0 0.0
    %580 = vmatpush1.xpose.msra.mxu0 0.0
    %581 = vmatprep.subr.mxu0 0.0
    %582 = vmatpush1.xpose.msra.mxu0 0.0
    %583 = vmatprep.subr.mxu0 0.0
    %584 = vmatpush1.xpose.msra.mxu0 0.0
    %585 = vmatprep.subr.mxu0 0.0
    %586 = vmatpush1.xpose.msra.mxu0 0.0
    %587 = vmatprep.subr.mxu0 0.0
    %588 = vmatpush1.xpose.msra.mxu0 0.0
    %589 = vmatprep.subr.mxu0 0.0
    %590 = vmatpush1.xpose.msra.mxu0 0.0
    %591 = vmatprep.subr.mxu0 0.0
    %592 = vmatpush1.xpose.msra.mxu0 0.0
    %593 = vmatprep.subr.mxu0 0.0
    %594 = vmatpush1.xpose.msra.mxu0 0.0
    %595 = vmatprep.mubr.f32.mxu0 0.0
    %596 = vmatmul.mubr.f32.gmra.mrb[0].mxu0 %v178
    %v597 = vpop.f32.mrb[0].mxu0
    %v598 = vadd.f32 %v180, %v597
    %v599 = vpop.f32.mrb[0].mxu0
    %600 = vdwg.mxu0
    %601 = vmatprep.subr.mxu0 0.0
    %602 = vmatpush1.xpose.msra.mxu0 %v146
    %603 = vmatprep.subr.mxu0 0.0
    %604 = vmatpush1.xpose.msra.mxu0 %v147
    %605 = vmatprep.subr.mxu0 0.0
    %606 = vmatpush1.xpose.msra.mxu0 %v148
    %607 = vmatprep.subr.mxu0 0.0
    %608 = vmatpush1.xpose.msra.mxu0 %v149
    %609 = vmatprep.subr.mxu0 0.0
    %610 = vmatpush1.xpose.msra.mxu0 %v150
    %611 = vmatprep.subr.mxu0 0.0
    %612 = vmatpush1.xpose.msra.mxu0 %v151
    %613 = vmatprep.subr.mxu0 0.0
    %614 = vmatpush1.xpose.msra.mxu0 %v152
    %615 = vmatprep.subr.mxu0 0.0
    %616 = vmatpush1.xpose.msra.mxu0 %v153
    %617 = vmatprep.subr.mxu0 0.0
    %618 = vmatpush1.xpose.msra.mxu0 %v154
    %619 = vmatprep.subr.mxu0 0.0
    %620 = vmatpush1.xpose.msra.mxu0 %v155
    %621 = vmatprep.subr.mxu0 0.0
    %622 = vmatpush1.xpose.msra.mxu0 %v156
    %623 = vmatprep.subr.mxu0 0.0
    %624 = vmatpush1.xpose.msra.mxu0 %v157
    %625 = vmatprep.subr.mxu0 0.0
    %626 = vmatpush1.xpose.msra.mxu0 %v158
    %627 = vmatprep.subr.mxu0 0.0
    %628 = vmatpush1.xpose.msra.mxu0 %v159
    %629 = vmatprep.subr.mxu0 0.0
    %630 = vmatpush1.xpose.msra.mxu0 %v160
    %631 = vmatprep.subr.mxu0 0.0
    %632 = vmatpush1.xpose.msra.mxu0 %v161
    %633 = vmatprep.subr.mxu0 0.0
    %634 = vmatpush1.xpose.msra.mxu0 0.0
    %635 = vmatprep.subr.mxu0 0.0
    %636 = vmatpush1.xpose.msra.mxu0 0.0
    %637 = vmatprep.subr.mxu0 0.0
    %638 = vmatpush1.xpose.msra.mxu0 0.0
    %639 = vmatprep.subr.mxu0 0.0
    %640 = vmatpush1.xpose.msra.mxu0 0.0
    %641 = vmatprep.subr.mxu0 0.0
    %642 = vmatpush1.xpose.msra.mxu0 0.0
    %643 = vmatprep.subr.mxu0 0.0
    %644 = vmatpush1.xpose.msra.mxu0 0.0
    %645 = vmatprep.subr.mxu0 0.0
    %646 = vmatpush1.xpose.msra.mxu0 0.0
    %647 = vmatprep.subr.mxu0 0.0
    %648 = vmatpush1.xpose.msra.mxu0 0.0
    %649 = vmatprep.subr.mxu0 0.0
    %650 = vmatpush1.xpose.msra.mxu0 0.0
    %651 = vmatprep.subr.mxu0 0.0
    %652 = vmatpush1.xpose.msra.mxu0 0.0
    %653 = vmatprep.subr.mxu0 0.0
    %654 = vmatpush1.xpose.msra.mxu0 0.0
    %655 = vmatprep.subr.mxu0 0.0
    %656 = vmatpush1.xpose.msra.mxu0 0.0
    %657 = vmatprep.subr.mxu0 0.0
    %658 = vmatpush1.xpose.msra.mxu0 0.0
    %659 = vmatprep.subr.mxu0 0.0
    %660 = vmatpush1.xpose.msra.mxu0 0.0
    %661 = vmatprep.subr.mxu0 0.0
    %662 = vmatpush1.xpose.msra.mxu0 0.0
    %663 = vmatprep.subr.mxu0 0.0
    %664 = vmatpush1.xpose.msra.mxu0 0.0
    %665 = vmatprep.mubr.f32.mxu0 0.0
    %666 = vmatmul.mubr.f32.gmra.mrb[0].mxu0 %v178
    %v667 = vpop.f32.mrb[0].mxu0
    %v668 = vadd.f32 %v180, %v667
    %v669 = vpop.f32.mrb[0].mxu0
    %670 = vdwg.mxu0
    %671 = vmatprep.subr.mxu0 0.0
    %672 = vmatpush1.xpose.msra.mxu0 %v162
    %673 = vmatprep.subr.mxu0 0.0
    %674 = vmatpush1.xpose.msra.mxu0 %v163
    %675 = vmatprep.subr.mxu0 0.0
    %676 = vmatpush1.xpose.msra.mxu0 %v164
    %677 = vmatprep.subr.mxu0 0.0
    %678 = vmatpush1.xpose.msra.mxu0 %v165
    %679 = vmatprep.subr.mxu0 0.0
    %680 = vmatpush1.xpose.msra.mxu0 %v166
    %681 = vmatprep.subr.mxu0 0.0
    %682 = vmatpush1.xpose.msra.mxu0 %v167
    %683 = vmatprep.subr.mxu0 0.0
    %684 = vmatpush1.xpose.msra.mxu0 %v168
    %685 = vmatprep.subr.mxu0 0.0
    %686 = vmatpush1.xpose.msra.mxu0 %v169
    %687 = vmatprep.subr.mxu0 0.0
    %688 = vmatpush1.xpose.msra.mxu0 %v170
    %689 = vmatprep.subr.mxu0 0.0
    %690 = vmatpush1.xpose.msra.mxu0 %v171
    %691 = vmatprep.subr.mxu0 0.0
    %692 = vmatpush1.xpose.msra.mxu0 %v172
    %693 = vmatprep.subr.mxu0 0.0
    %694 = vmatpush1.xpose.msra.mxu0 %v173
    %695 = vmatprep.subr.mxu0 0.0
    %696 = vmatpush1.xpose.msra.mxu0 %v174
    %697 = vmatprep.subr.mxu0 0.0
    %698 = vmatpush1.xpose.msra.mxu0 %v175
    %699 = vmatprep.subr.mxu0 0.0
    %700 = vmatpush1.xpose.msra.mxu0 %v176
    %701 = vmatprep.subr.mxu0 0.0
    %702 = vmatpush1.xpose.msra.mxu0 %v177
    %703 = vmatprep.subr.mxu0 0.0
    %704 = vmatpush1.xpose.msra.mxu0 0.0
    %705 = vmatprep.subr.mxu0 0.0
    %706 = vmatpush1.xpose.msra.mxu0 0.0
    %707 = vmatprep.subr.mxu0 0.0
    %708 = vmatpush1.xpose.msra.mxu0 0.0
    %709 = vmatprep.subr.mxu0 0.0
    %710 = vmatpush1.xpose.msra.mxu0 0.0
    %711 = vmatprep.subr.mxu0 0.0
    %712 = vmatpush1.xpose.msra.mxu0 0.0
    %713 = vmatprep.subr.mxu0 0.0
    %714 = vmatpush1.xpose.msra.mxu0 0.0
    %715 = vmatprep.subr.mxu0 0.0
    %716 = vmatpush1.xpose.msra.mxu0 0.0
    %717 = vmatprep.subr.mxu0 0.0
    %718 = vmatpush1.xpose.msra.mxu0 0.0
    %719 = vmatprep.subr.mxu0 0.0
    %720 = vmatpush1.xpose.msra.mxu0 0.0
    %721 = vmatprep.subr.mxu0 0.0
    %722 = vmatpush1.xpose.msra.mxu0 0.0
    %723 = vmatprep.subr.mxu0 0.0
    %724 = vmatpush1.xpose.msra.mxu0 0.0
    %725 = vmatprep.subr.mxu0 0.0
    %726 = vmatpush1.xpose.msra.mxu0 0.0
    %727 = vmatprep.subr.mxu0 0.0
    %728 = vmatpush1.xpose.msra.mxu0 0.0
    %729 = vmatprep.subr.mxu0 0.0
    %730 = vmatpush1.xpose.msra.mxu0 0.0
    %731 = vmatprep.subr.mxu0 0.0
    %732 = vmatpush1.xpose.msra.mxu0 0.0
    %733 = vmatprep.subr.mxu0 0.0
    %734 = vmatpush1.xpose.msra.mxu0 0.0
    %735 = vmatprep.mubr.f32.mxu0 0.0
    %736 = vmatmul.mubr.f32.gmra.mrb[0].mxu0 %v178
    %v737 = vpop.f32.mrb[0].mxu0
    %v738 = vadd.f32 %v180, %v737
    %v739 = vpop.f32.mrb[0].mxu0
    %740 = vdwg.mxu0
    %v741 = vld [vmem:[#allocation6] sm:$0x1]
    %v742 = vld [vmem:[#allocation6 + $0x1] sm:$0x1]
    %v743 = vld [vmem:[#allocation6 + $0x2] sm:$0x1]
    %v744 = vld [vmem:[#allocation6 + $0x3] sm:$0x1]
    %v745 = vld [vmem:[#allocation6 + $0x4] sm:$0x1]
    %v746 = vld [vmem:[#allocation6 + $0x5] sm:$0x1]
    %v747 = vld [vmem:[#allocation6 + $0x6] sm:$0x1]
    %v748 = vld [vmem:[#allocation6 + $0x7] sm:$0x1]
    %vm749 = vcmp.eq.f32.partialorder %v741, 0.0
    %vm750 = vcmp.eq.f32.partialorder %v742, 0.0
    %vm751 = vcmp.eq.f32.partialorder %v743, 0.0
    %vm752 = vcmp.eq.f32.partialorder %v744, 0.0
    %vm753 = vcmp.eq.f32.partialorder %v745, 0.0
    %vm754 = vcmp.eq.f32.partialorder %v746, 0.0
    %vm755 = vcmp.eq.f32.partialorder %v747, 0.0
    %vm756 = vcmp.eq.f32.partialorder %v748, 0.0
    %v757 = vsel %vm749, %v248, %v741
    %v758 = vsel %vm750, %v318, %v742
    %v759 = vsel %vm751, %v388, %v743
    %v760 = vsel %vm752, %v458, %v744
    %v761 = vsel %vm753, %v528, %v745
    %v762 = vsel %vm754, %v598, %v746
    %v763 = vsel %vm755, %v668, %v747
    %v764 = vsel %vm756, %v738, %v748
    %vm765 = vcmask 1040384
    %v766 = vsel %vm765, %v757, -inf
    %767 = vmax.xlane.f32.xlu0 %v766
    %v768 = vpop.xlane.xlu0 %767
    %v769 = vsel %vm765, %v758, -inf
    %770 = vmax.xlane.f32.xlu0 %v769
    %v771 = vpop.xlane.xlu0 %770
    %v772 = vsel %vm765, %v759, -inf
    %773 = vmax.xlane.f32.xlu0 %v772
    %v774 = vpop.xlane.xlu0 %773
    %v775 = vsel %vm765, %v760, -inf
    %776 = vmax.xlane.f32.xlu0 %v775
    %v777 = vpop.xlane.xlu0 %776
    %v778 = vsel %vm765, %v761, -inf
    %779 = vmax.xlane.f32.xlu0 %v778
    %v780 = vpop.xlane.xlu0 %779
    %v781 = vsel %vm765, %v762, -inf
    %782 = vmax.xlane.f32.xlu0 %v781
    %v783 = vpop.xlane.xlu0 %782
    %v784 = vsel %vm765, %v763, -inf
    %785 = vmax.xlane.f32.xlu0 %v784
    %v786 = vpop.xlane.xlu0 %785
    %v787 = vsel %vm765, %v764, -inf
    %788 = vmax.xlane.f32.xlu0 %v787
    %v789 = vpop.xlane.xlu0 %788
    %v790 = vsub.f32 %v757, %v768
    %v791 = vsub.f32 %v758, %v771
    %v792 = vsub.f32 %v759, %v774
    %v793 = vsub.f32 %v760, %v777
    %v794 = vsub.f32 %v761, %v780
    %v795 = vsub.f32 %v762, %v783
    %v796 = vsub.f32 %v763, %v786
    %v797 = vsub.f32 %v764, %v789
    %v798 = vmul.f32 %v790, 1.442695
    %v799 = vpow.pop %v798
    %v800 = vmul.f32 %v791, 1.442695
    %v801 = vpow.pop %v800
    %v802 = vmul.f32 %v792, 1.442695
    %v803 = vpow.pop %v802
    %v804 = vmul.f32 %v793, 1.442695
    %v805 = vpow.pop %v804
    %v806 = vmul.f32 %v794, 1.442695
    %v807 = vpow.pop %v806
    %v808 = vmul.f32 %v795, 1.442695
    %v809 = vpow.pop %v808
    %v810 = vmul.f32 %v796, 1.442695
    %v811 = vpow.pop %v810
    %v812 = vmul.f32 %v797, 1.442695
    %v813 = vpow.pop %v812
    %v814 = vsel %vm765, %v799, 0.0
    %815 = vadd.xlane.f32.xlu0 %v814
    %v816 = vpop.xlane.xlu0 %815
    %v817 = vsel %vm765, %v801, 0.0
    %818 = vadd.xlane.f32.xlu0 %v817
    %v819 = vpop.xlane.xlu0 %818
    %v820 = vsel %vm765, %v803, 0.0
    %821 = vadd.xlane.f32.xlu0 %v820
    %v822 = vpop.xlane.xlu0 %821
    %v823 = vsel %vm765, %v805, 0.0
    %824 = vadd.xlane.f32.xlu0 %v823
    %v825 = vpop.xlane.xlu0 %824
    %v826 = vsel %vm765, %v807, 0.0
    %827 = vadd.xlane.f32.xlu0 %v826
    %v828 = vpop.xlane.xlu0 %827
    %v829 = vsel %vm765, %v809, 0.0
    %830 = vadd.xlane.f32.xlu0 %v829
    %v831 = vpop.xlane.xlu0 %830
    %v832 = vsel %vm765, %v811, 0.0
    %833 = vadd.xlane.f32.xlu0 %v832
    %v834 = vpop.xlane.xlu0 %833
    %v835 = vsel %vm765, %v813, 0.0
    %836 = vadd.xlane.f32.xlu0 %v835
    %v837 = vpop.xlane.xlu0 %836
    %v838 = vrcp.pop %v816
    %v839 = vrcp.pop %v819
    %v840 = vrcp.pop %v822
    %v841 = vrcp.pop %v825
    %v842 = vrcp.pop %v828
    %v843 = vrcp.pop %v831
    %v844 = vrcp.pop %v834
    %v845 = vrcp.pop %v837
    %v846 = vmul.f32 %v799, %v838
    %v847 = vmul.f32 %v801, %v839
    %v848 = vmul.f32 %v803, %v840
    %v849 = vmul.f32 %v805, %v841
    %v850 = vmul.f32 %v807, %v842
    %v851 = vmul.f32 %v809, %v843
    %v852 = vmul.f32 %v811, %v844
    %v853 = vmul.f32 %v813, %v845
    %854 = vmatprep.subr.mxu0 0.0
    %855 = vmatpush1.msra.mxu0 %v50
    %856 = vmatprep.subr.mxu0 0.0
    %857 = vmatpush1.msra.mxu0 %v51
    %858 = vmatprep.subr.mxu0 0.0
    %859 = vmatpush1.msra.mxu0 %v52
    %860 = vmatprep.subr.mxu0 0.0
    %861 = vmatpush1.msra.mxu0 %v53
    %862 = vmatprep.subr.mxu0 0.0
    %863 = vmatpush1.msra.mxu0 %v54
    %864 = vmatprep.subr.mxu0 0.0
    %865 = vmatpush1.msra.mxu0 %v55
    %866 = vmatprep.subr.mxu0 0.0
    %867 = vmatpush1.msra.mxu0 %v56
    %868 = vmatprep.subr.mxu0 0.0
    %869 = vmatpush1.msra.mxu0 %v57
    %870 = vmatprep.subr.mxu0 0.0
    %871 = vmatpush1.msra.mxu0 %v58
    %872 = vmatprep.subr.mxu0 0.0
    %873 = vmatpush1.msra.mxu0 %v59
    %874 = vmatprep.subr.mxu0 0.0
    %875 = vmatpush1.msra.mxu0 %v60
    %876 = vmatprep.subr.mxu0 0.0
    %877 = vmatpush1.msra.mxu0 %v61
    %878 = vmatprep.subr.mxu0 0.0
    %879 = vmatpush1.msra.mxu0 %v62
    %880 = vmatprep.subr.mxu0 0.0
    %881 = vmatpush1.msra.mxu0 %v63
    %882 = vmatprep.subr.mxu0 0.0
    %883 = vmatpush1.msra.mxu0 %v64
    %884 = vmatprep.subr.mxu0 0.0
    %885 = vmatpush1.msra.mxu0 %v65
    %886 = vmatprep.subr.mxu0 0.0
    %887 = vmatpush1.msra.mxu0 0.0
    %888 = vmatprep.subr.mxu0 0.0
    %889 = vmatpush1.msra.mxu0 0.0
    %890 = vmatprep.subr.mxu0 0.0
    %891 = vmatpush1.msra.mxu0 0.0
    %892 = vmatprep.subr.mxu0 0.0
    %893 = vmatpush1.msra.mxu0 0.0
    %894 = vmatprep.subr.mxu0 0.0
    %895 = vmatpush1.msra.mxu0 0.0
    %896 = vmatprep.subr.mxu0 0.0
    %897 = vmatpush1.msra.mxu0 0.0
    %898 = vmatprep.subr.mxu0 0.0
    %899 = vmatpush1.msra.mxu0 0.0
    %900 = vmatprep.subr.mxu0 0.0
    %901 = vmatpush1.msra.mxu0 0.0
    %902 = vmatprep.subr.mxu0 0.0
    %903 = vmatpush1.msra.mxu0 0.0
    %904 = vmatprep.subr.mxu0 0.0
    %905 = vmatpush1.msra.mxu0 0.0
    %906 = vmatprep.subr.mxu0 0.0
    %907 = vmatpush1.msra.mxu0 0.0
    %908 = vmatprep.subr.mxu0 0.0
    %909 = vmatpush1.msra.mxu0 0.0
    %910 = vmatprep.subr.mxu0 0.0
    %911 = vmatpush1.msra.mxu0 0.0
    %912 = vmatprep.subr.mxu0 0.0
    %913 = vmatpush1.msra.mxu0 0.0
    %914 = vmatprep.subr.mxu0 0.0
    %915 = vmatpush1.msra.mxu0 0.0
    %916 = vmatprep.subr.mxu0 0.0
    %917 = vmatpush1.msra.mxu0 0.0
    %918 = vmatprep.mubr.f32.mxu0 0.0
    %919 = vmatmul.mubr.f32.gmra.mrb[0].mxu0 %v846
    %v920 = vpop.f32.mrb[0].mxu0
    %v921 = vadd.f32 0.0, %v920
    %v922 = vpop.f32.mrb[0].mxu0
    %923 = vdwg.mxu0
    %924 = vmatprep.subr.mxu0 0.0
    %925 = vmatpush1.msra.mxu0 %v66
    %926 = vmatprep.subr.mxu0 0.0
    %927 = vmatpush1.msra.mxu0 %v67
    %928 = vmatprep.subr.mxu0 0.0
    %929 = vmatpush1.msra.mxu0 %v68
    %930 = vmatprep.subr.mxu0 0.0
    %931 = vmatpush1.msra.mxu0 %v69
    %932 = vmatprep.subr.mxu0 0.0
    %933 = vmatpush1.msra.mxu0 %v70
    %934 = vmatprep.subr.mxu0 0.0
    %935 = vmatpush1.msra.mxu0 %v71
    %936 = vmatprep.subr.mxu0 0.0
    %937 = vmatpush1.msra.mxu0 %v72
    %938 = vmatprep.subr.mxu0 0.0
    %939 = vmatpush1.msra.mxu0 %v73
    %940 = vmatprep.subr.mxu0 0.0
    %941 = vmatpush1.msra.mxu0 %v74
    %942 = vmatprep.subr.mxu0 0.0
    %943 = vmatpush1.msra.mxu0 %v75
    %944 = vmatprep.subr.mxu0 0.0
    %945 = vmatpush1.msra.mxu0 %v76
    %946 = vmatprep.subr.mxu0 0.0
    %947 = vmatpush1.msra.mxu0 %v77
    %948 = vmatprep.subr.mxu0 0.0
    %949 = vmatpush1.msra.mxu0 %v78
    %950 = vmatprep.subr.mxu0 0.0
    %951 = vmatpush1.msra.mxu0 %v79
    %952 = vmatprep.subr.mxu0 0.0
    %953 = vmatpush1.msra.mxu0 %v80
    %954 = vmatprep.subr.mxu0 0.0
    %955 = vmatpush1.msra.mxu0 %v81
    %956 = vmatprep.subr.mxu0 0.0
    %957 = vmatpush1.msra.mxu0 0.0
    %958 = vmatprep.subr.mxu0 0.0
    %959 = vmatpush1.msra.mxu0 0.0
    %960 = vmatprep.subr.mxu0 0.0
    %961 = vmatpush1.msra.mxu0 0.0
    %962 = vmatprep.subr.mxu0 0.0
    %963 = vmatpush1.msra.mxu0 0.0
    %964 = vmatprep.subr.mxu0 0.0
    %965 = vmatpush1.msra.mxu0 0.0
    %966 = vmatprep.subr.mxu0 0.0
    %967 = vmatpush1.msra.mxu0 0.0
    %968 = vmatprep.subr.mxu0 0.0
    %969 = vmatpush1.msra.mxu0 0.0
    %970 = vmatprep.subr.mxu0 0.0
    %971 = vmatpush1.msra.mxu0 0.0
    %972 = vmatprep.subr.mxu0 0.0
    %973 = vmatpush1.msra.mxu0 0.0
    %974 = vmatprep.subr.mxu0 0.0
    %975 = vmatpush1.msra.mxu0 0.0
    %976 = vmatprep.subr.mxu0 0.0
    %977 = vmatpush1.msra.mxu0 0.0
    %978 = vmatprep.subr.mxu0 0.0
    %979 = vmatpush1.msra.mxu0 0.0
    %980 = vmatprep.subr.mxu0 0.0
    %981 = vmatpush1.msra.mxu0 0.0
    %982 = vmatprep.subr.mxu0 0.0
    %983 = vmatpush1.msra.mxu0 0.0
    %984 = vmatprep.subr.mxu0 0.0
    %985 = vmatpush1.msra.mxu0 0.0
    %986 = vmatprep.subr.mxu0 0.0
    %987 = vmatpush1.msra.mxu0 0.0
    %988 = vmatprep.mubr.f32.mxu0 0.0
    %989 = vmatmul.mubr.f32.gmra.mrb[0].mxu0 %v847
    %v990 = vpop.f32.mrb[0].mxu0
    %v991 = vadd.f32 0.0, %v990
    %v992 = vpop.f32.mrb[0].mxu0
    %993 = vdwg.mxu0
    %994 = vmatprep.subr.mxu0 0.0
    %995 = vmatpush1.msra.mxu0 %v82
    %996 = vmatprep.subr.mxu0 0.0
    %997 = vmatpush1.msra.mxu0 %v83
    %998 = vmatprep.subr.mxu0 0.0
    %999 = vmatpush1.msra.mxu0 %v84
    %1000 = vmatprep.subr.mxu0 0.0
    %1001 = vmatpush1.msra.mxu0 %v85
    %1002 = vmatprep.subr.mxu0 0.0
    %1003 = vmatpush1.msra.mxu0 %v86
    %1004 = vmatprep.subr.mxu0 0.0
    %1005 = vmatpush1.msra.mxu0 %v87
    %1006 = vmatprep.subr.mxu0 0.0
    %1007 = vmatpush1.msra.mxu0 %v88
    %1008 = vmatprep.subr.mxu0 0.0
    %1009 = vmatpush1.msra.mxu0 %v89
    %1010 = vmatprep.subr.mxu0 0.0
    %1011 = vmatpush1.msra.mxu0 %v90
    %1012 = vmatprep.subr.mxu0 0.0
    %1013 = vmatpush1.msra.mxu0 %v91
    %1014 = vmatprep.subr.mxu0 0.0
    %1015 = vmatpush1.msra.mxu0 %v92
    %1016 = vmatprep.subr.mxu0 0.0
    %1017 = vmatpush1.msra.mxu0 %v93
    %1018 = vmatprep.subr.mxu0 0.0
    %1019 = vmatpush1.msra.mxu0 %v94
    %1020 = vmatprep.subr.mxu0 0.0
    %1021 = vmatpush1.msra.mxu0 %v95
    %1022 = vmatprep.subr.mxu0 0.0
    %1023 = vmatpush1.msra.mxu0 %v96
    %1024 = vmatprep.subr.mxu0 0.0
    %1025 = vmatpush1.msra.mxu0 %v97
    %1026 = vmatprep.subr.mxu0 0.0
    %1027 = vmatpush1.msra.mxu0 0.0
    %1028 = vmatprep.subr.mxu0 0.0
    %1029 = vmatpush1.msra.mxu0 0.0
    %1030 = vmatprep.subr.mxu0 0.0
    %1031 = vmatpush1.msra.mxu0 0.0
    %1032 = vmatprep.subr.mxu0 0.0
    %1033 = vmatpush1.msra.mxu0 0.0
    %1034 = vmatprep.subr.mxu0 0.0
    %1035 = vmatpush1.msra.mxu0 0.0
    %1036 = vmatprep.subr.mxu0 0.0
    %1037 = vmatpush1.msra.mxu0 0.0
    %1038 = vmatprep.subr.mxu0 0.0
    %1039 = vmatpush1.msra.mxu0 0.0
    %1040 = vmatprep.subr.mxu0 0.0
    %1041 = vmatpush1.msra.mxu0 0.0
    %1042 = vmatprep.subr.mxu0 0.0
    %1043 = vmatpush1.msra.mxu0 0.0
    %1044 = vmatprep.subr.mxu0 0.0
    %1045 = vmatpush1.msra.mxu0 0.0
    %1046 = vmatprep.subr.mxu0 0.0
    %1047 = vmatpush1.msra.mxu0 0.0
    %1048 = vmatprep.subr.mxu0 0.0
    %1049 = vmatpush1.msra.mxu0 0.0
    %1050 = vmatprep.subr.mxu0 0.0
    %1051 = vmatpush1.msra.mxu0 0.0
    %1052 = vmatprep.subr.mxu0 0.0
    %1053 = vmatpush1.msra.mxu0 0.0
    %1054 = vmatprep.subr.mxu0 0.0
    %1055 = vmatpush1.msra.mxu0 0.0
    %1056 = vmatprep.subr.mxu0 0.0
    %1057 = vmatpush1.msra.mxu0 0.0
    %1058 = vmatprep.mubr.f32.mxu0 0.0
    %1059 = vmatmul.mubr.f32.gmra.mrb[0].mxu0 %v848
    %v1060 = vpop.f32.mrb[0].mxu0
    %v1061 = vadd.f32 0.0, %v1060
    %v1062 = vpop.f32.mrb[0].mxu0
    %1063 = vdwg.mxu0
    %1064 = vmatprep.subr.mxu0 0.0
    %1065 = vmatpush1.msra.mxu0 %v98
    %1066 = vmatprep.subr.mxu0 0.0
    %1067 = vmatpush1.msra.mxu0 %v99
    %1068 = vmatprep.subr.mxu0 0.0
    %1069 = vmatpush1.msra.mxu0 %v100
    %1070 = vmatprep.subr.mxu0 0.0
    %1071 = vmatpush1.msra.mxu0 %v101
    %1072 = vmatprep.subr.mxu0 0.0
    %1073 = vmatpush1.msra.mxu0 %v102
    %1074 = vmatprep.subr.mxu0 0.0
    %1075 = vmatpush1.msra.mxu0 %v103
    %1076 = vmatprep.subr.mxu0 0.0
    %1077 = vmatpush1.msra.mxu0 %v104
    %1078 = vmatprep.subr.mxu0 0.0
    %1079 = vmatpush1.msra.mxu0 %v105
    %1080 = vmatprep.subr.mxu0 0.0
    %1081 = vmatpush1.msra.mxu0 %v106
    %1082 = vmatprep.subr.mxu0 0.0
    %1083 = vmatpush1.msra.mxu0 %v107
    %1084 = vmatprep.subr.mxu0 0.0
    %1085 = vmatpush1.msra.mxu0 %v108
    %1086 = vmatprep.subr.mxu0 0.0
    %1087 = vmatpush1.msra.mxu0 %v109
    %1088 = vmatprep.subr.mxu0 0.0
    %1089 = vmatpush1.msra.mxu0 %v110
    %1090 = vmatprep.subr.mxu0 0.0
    %1091 = vmatpush1.msra.mxu0 %v111
    %1092 = vmatprep.subr.mxu0 0.0
    %1093 = vmatpush1.msra.mxu0 %v112
    %1094 = vmatprep.subr.mxu0 0.0
    %1095 = vmatpush1.msra.mxu0 %v113
    %1096 = vmatprep.subr.mxu0 0.0
    %1097 = vmatpush1.msra.mxu0 0.0
    %1098 = vmatprep.subr.mxu0 0.0
    %1099 = vmatpush1.msra.mxu0 0.0
    %1100 = vmatprep.subr.mxu0 0.0
    %1101 = vmatpush1.msra.mxu0 0.0
    %1102 = vmatprep.subr.mxu0 0.0
    %1103 = vmatpush1.msra.mxu0 0.0
    %1104 = vmatprep.subr.mxu0 0.0
    %1105 = vmatpush1.msra.mxu0 0.0
    %1106 = vmatprep.subr.mxu0 0.0
    %1107 = vmatpush1.msra.mxu0 0.0
    %1108 = vmatprep.subr.mxu0 0.0
    %1109 = vmatpush1.msra.mxu0 0.0
    %1110 = vmatprep.subr.mxu0 0.0
    %1111 = vmatpush1.msra.mxu0 0.0
    %1112 = vmatprep.subr.mxu0 0.0
    %1113 = vmatpush1.msra.mxu0 0.0
    %1114 = vmatprep.subr.mxu0 0.0
    %1115 = vmatpush1.msra.mxu0 0.0
    %1116 = vmatprep.subr.mxu0 0.0
    %1117 = vmatpush1.msra.mxu0 0.0
    %1118 = vmatprep.subr.mxu0 0.0
    %1119 = vmatpush1.msra.mxu0 0.0
    %1120 = vmatprep.subr.mxu0 0.0
    %1121 = vmatpush1.msra.mxu0 0.0
    %1122 = vmatprep.subr.mxu0 0.0
    %1123 = vmatpush1.msra.mxu0 0.0
    %1124 = vmatprep.subr.mxu0 0.0
    %1125 = vmatpush1.msra.mxu0 0.0
    %1126 = vmatprep.subr.mxu0 0.0
    %1127 = vmatpush1.msra.mxu0 0.0
    %1128 = vmatprep.mubr.f32.mxu0 0.0
    %1129 = vmatmul.mubr.f32.gmra.mrb[0].mxu0 %v849
    %v1130 = vpop.f32.mrb[0].mxu0
    %v1131 = vadd.f32 0.0, %v1130
    %v1132 = vpop.f32.mrb[0].mxu0
    %1133 = vdwg.mxu0
    %1134 = vmatprep.subr.mxu0 0.0
    %1135 = vmatpush1.msra.mxu0 %v114
    %1136 = vmatprep.subr.mxu0 0.0
    %1137 = vmatpush1.msra.mxu0 %v115
    %1138 = vmatprep.subr.mxu0 0.0
    %1139 = vmatpush1.msra.mxu0 %v116
    %1140 = vmatprep.subr.mxu0 0.0
    %1141 = vmatpush1.msra.mxu0 %v117
    %1142 = vmatprep.subr.mxu0 0.0
    %1143 = vmatpush1.msra.mxu0 %v118
    %1144 = vmatprep.subr.mxu0 0.0
    %1145 = vmatpush1.msra.mxu0 %v119
    %1146 = vmatprep.subr.mxu0 0.0
    %1147 = vmatpush1.msra.mxu0 %v120
    %1148 = vmatprep.subr.mxu0 0.0
    %1149 = vmatpush1.msra.mxu0 %v121
    %1150 = vmatprep.subr.mxu0 0.0
    %1151 = vmatpush1.msra.mxu0 %v122
    %1152 = vmatprep.subr.mxu0 0.0
    %1153 = vmatpush1.msra.mxu0 %v123
    %1154 = vmatprep.subr.mxu0 0.0
    %1155 = vmatpush1.msra.mxu0 %v124
    %1156 = vmatprep.subr.mxu0 0.0
    %1157 = vmatpush1.msra.mxu0 %v125
    %1158 = vmatprep.subr.mxu0 0.0
    %1159 = vmatpush1.msra.mxu0 %v126
    %1160 = vmatprep.subr.mxu0 0.0
    %1161 = vmatpush1.msra.mxu0 %v127
    %1162 = vmatprep.subr.mxu0 0.0
    %1163 = vmatpush1.msra.mxu0 %v128
    %1164 = vmatprep.subr.mxu0 0.0
    %1165 = vmatpush1.msra.mxu0 %v129
    %1166 = vmatprep.subr.mxu0 0.0
    %1167 = vmatpush1.msra.mxu0 0.0
    %1168 = vmatprep.subr.mxu0 0.0
    %1169 = vmatpush1.msra.mxu0 0.0
    %1170 = vmatprep.subr.mxu0 0.0
    %1171 = vmatpush1.msra.mxu0 0.0
    %1172 = vmatprep.subr.mxu0 0.0
    %1173 = vmatpush1.msra.mxu0 0.0
    %1174 = vmatprep.subr.mxu0 0.0
    %1175 = vmatpush1.msra.mxu0 0.0
    %1176 = vmatprep.subr.mxu0 0.0
    %1177 = vmatpush1.msra.mxu0 0.0
    %1178 = vmatprep.subr.mxu0 0.0
    %1179 = vmatpush1.msra.mxu0 0.0
    %1180 = vmatprep.subr.mxu0 0.0
    %1181 = vmatpush1.msra.mxu0 0.0
    %1182 = vmatprep.subr.mxu0 0.0
    %1183 = vmatpush1.msra.mxu0 0.0
    %1184 = vmatprep.subr.mxu0 0.0
    %1185 = vmatpush1.msra.mxu0 0.0
    %1186 = vmatprep.subr.mxu0 0.0
    %1187 = vmatpush1.msra.mxu0 0.0
    %1188 = vmatprep.subr.mxu0 0.0
    %1189 = vmatpush1.msra.mxu0 0.0
    %1190 = vmatprep.subr.mxu0 0.0
    %1191 = vmatpush1.msra.mxu0 0.0
    %1192 = vmatprep.subr.mxu0 0.0
    %1193 = vmatpush1.msra.mxu0 0.0
    %1194 = vmatprep.subr.mxu0 0.0
    %1195 = vmatpush1.msra.mxu0 0.0
    %1196 = vmatprep.subr.mxu0 0.0
    %1197 = vmatpush1.msra.mxu0 0.0
    %1198 = vmatprep.mubr.f32.mxu0 0.0
    %1199 = vmatmul.mubr.f32.gmra.mrb[0].mxu0 %v850
    %v1200 = vpop.f32.mrb[0].mxu0
    %v1201 = vadd.f32 0.0, %v1200
    %v1202 = vpop.f32.mrb[0].mxu0
    %1203 = vdwg.mxu0
    %1204 = vmatprep.subr.mxu0 0.0
    %1205 = vmatpush1.msra.mxu0 %v130
    %1206 = vmatprep.subr.mxu0 0.0
    %1207 = vmatpush1.msra.mxu0 %v131
    %1208 = vmatprep.subr.mxu0 0.0
    %1209 = vmatpush1.msra.mxu0 %v132
    %1210 = vmatprep.subr.mxu0 0.0
    %1211 = vmatpush1.msra.mxu0 %v133
    %1212 = vmatprep.subr.mxu0 0.0
    %1213 = vmatpush1.msra.mxu0 %v134
    %1214 = vmatprep.subr.mxu0 0.0
    %1215 = vmatpush1.msra.mxu0 %v135
    %1216 = vmatprep.subr.mxu0 0.0
    %1217 = vmatpush1.msra.mxu0 %v136
    %1218 = vmatprep.subr.mxu0 0.0
    %1219 = vmatpush1.msra.mxu0 %v137
    %1220 = vmatprep.subr.mxu0 0.0
    %1221 = vmatpush1.msra.mxu0 %v138
    %1222 = vmatprep.subr.mxu0 0.0
    %1223 = vmatpush1.msra.mxu0 %v139
    %1224 = vmatprep.subr.mxu0 0.0
    %1225 = vmatpush1.msra.mxu0 %v140
    %1226 = vmatprep.subr.mxu0 0.0
    %1227 = vmatpush1.msra.mxu0 %v141
    %1228 = vmatprep.subr.mxu0 0.0
    %1229 = vmatpush1.msra.mxu0 %v142
    %1230 = vmatprep.subr.mxu0 0.0
    %1231 = vmatpush1.msra.mxu0 %v143
    %1232 = vmatprep.subr.mxu0 0.0
    %1233 = vmatpush1.msra.mxu0 %v144
    %1234 = vmatprep.subr.mxu0 0.0
    %1235 = vmatpush1.msra.mxu0 %v145
    %1236 = vmatprep.subr.mxu0 0.0
    %1237 = vmatpush1.msra.mxu0 0.0
    %1238 = vmatprep.subr.mxu0 0.0
    %1239 = vmatpush1.msra.mxu0 0.0
    %1240 = vmatprep.subr.mxu0 0.0
    %1241 = vmatpush1.msra.mxu0 0.0
    %1242 = vmatprep.subr.mxu0 0.0
    %1243 = vmatpush1.msra.mxu0 0.0
    %1244 = vmatprep.subr.mxu0 0.0
    %1245 = vmatpush1.msra.mxu0 0.0
    %1246 = vmatprep.subr.mxu0 0.0
    %1247 = vmatpush1.msra.mxu0 0.0
    %1248 = vmatprep.subr.mxu0 0.0
    %1249 = vmatpush1.msra.mxu0 0.0
    %1250 = vmatprep.subr.mxu0 0.0
    %1251 = vmatpush1.msra.mxu0 0.0
    %1252 = vmatprep.subr.mxu0 0.0
    %1253 = vmatpush1.msra.mxu0 0.0
    %1254 = vmatprep.subr.mxu0 0.0
    %1255 = vmatpush1.msra.mxu0 0.0
    %1256 = vmatprep.subr.mxu0 0.0
    %1257 = vmatpush1.msra.mxu0 0.0
    %1258 = vmatprep.subr.mxu0 0.0
    %1259 = vmatpush1.msra.mxu0 0.0
    %1260 = vmatprep.subr.mxu0 0.0
    %1261 = vmatpush1.msra.mxu0 0.0
    %1262 = vmatprep.subr.mxu0 0.0
    %1263 = vmatpush1.msra.mxu0 0.0
    %1264 = vmatprep.subr.mxu0 0.0
    %1265 = vmatpush1.msra.mxu0 0.0
    %1266 = vmatprep.subr.mxu0 0.0
    %1267 = vmatpush1.msra.mxu0 0.0
    %1268 = vmatprep.mubr.f32.mxu0 0.0
    %1269 = vmatmul.mubr.f32.gmra.mrb[0].mxu0 %v851
    %v1270 = vpop.f32.mrb[0].mxu0
    %v1271 = vadd.f32 0.0, %v1270
    %v1272 = vpop.f32.mrb[0].mxu0
    %1273 = vdwg.mxu0
    %1274 = vmatprep.subr.mxu0 0.0
    %1275 = vmatpush1.msra.mxu0 %v146
    %1276 = vmatprep.subr.mxu0 0.0
    %1277 = vmatpush1.msra.mxu0 %v147
    %1278 = vmatprep.subr.mxu0 0.0
    %1279 = vmatpush1.msra.mxu0 %v148
    %1280 = vmatprep.subr.mxu0 0.0
    %1281 = vmatpush1.msra.mxu0 %v149
    %1282 = vmatprep.subr.mxu0 0.0
    %1283 = vmatpush1.msra.mxu0 %v150
    %1284 = vmatprep.subr.mxu0 0.0
    %1285 = vmatpush1.msra.mxu0 %v151
    %1286 = vmatprep.subr.mxu0 0.0
    %1287 = vmatpush1.msra.mxu0 %v152
    %1288 = vmatprep.subr.mxu0 0.0
    %1289 = vmatpush1.msra.mxu0 %v153
    %1290 = vmatprep.subr.mxu0 0.0
    %1291 = vmatpush1.msra.mxu0 %v154
    %1292 = vmatprep.subr.mxu0 0.0
    %1293 = vmatpush1.msra.mxu0 %v155
    %1294 = vmatprep.subr.mxu0 0.0
    %1295 = vmatpush1.msra.mxu0 %v156
    %1296 = vmatprep.subr.mxu0 0.0
    %1297 = vmatpush1.msra.mxu0 %v157
    %1298 = vmatprep.subr.mxu0 0.0
    %1299 = vmatpush1.msra.mxu0 %v158
    %1300 = vmatprep.subr.mxu0 0.0
    %1301 = vmatpush1.msra.mxu0 %v159
    %1302 = vmatprep.subr.mxu0 0.0
    %1303 = vmatpush1.msra.mxu0 %v160
    %1304 = vmatprep.subr.mxu0 0.0
    %1305 = vmatpush1.msra.mxu0 %v161
    %1306 = vmatprep.subr.mxu0 0.0
    %1307 = vmatpush1.msra.mxu0 0.0
    %1308 = vmatprep.subr.mxu0 0.0
    %1309 = vmatpush1.msra.mxu0 0.0
    %1310 = vmatprep.subr.mxu0 0.0
    %1311 = vmatpush1.msra.mxu0 0.0
    %1312 = vmatprep.subr.mxu0 0.0
    %1313 = vmatpush1.msra.mxu0 0.0
    %1314 = vmatprep.subr.mxu0 0.0
    %1315 = vmatpush1.msra.mxu0 0.0
    %1316 = vmatprep.subr.mxu0 0.0
    %1317 = vmatpush1.msra.mxu0 0.0
    %1318 = vmatprep.subr.mxu0 0.0
    %1319 = vmatpush1.msra.mxu0 0.0
    %1320 = vmatprep.subr.mxu0 0.0
    %1321 = vmatpush1.msra.mxu0 0.0
    %1322 = vmatprep.subr.mxu0 0.0
    %1323 = vmatpush1.msra.mxu0 0.0
    %1324 = vmatprep.subr.mxu0 0.0
    %1325 = vmatpush1.msra.mxu0 0.0
    %1326 = vmatprep.subr.mxu0 0.0
    %1327 = vmatpush1.msra.mxu0 0.0
    %1328 = vmatprep.subr.mxu0 0.0
    %1329 = vmatpush1.msra.mxu0 0.0
    %1330 = vmatprep.subr.mxu0 0.0
    %1331 = vmatpush1.msra.mxu0 0.0
    %1332 = vmatprep.subr.mxu0 0.0
    %1333 = vmatpush1.msra.mxu0 0.0
    %1334 = vmatprep.subr.mxu0 0.0
    %1335 = vmatpush1.msra.mxu0 0.0
    %1336 = vmatprep.subr.mxu0 0.0
    %1337 = vmatpush1.msra.mxu0 0.0
    %1338 = vmatprep.mubr.f32.mxu0 0.0
    %1339 = vmatmul.mubr.f32.gmra.mrb[0].mxu0 %v852
    %v1340 = vpop.f32.mrb[0].mxu0
    %v1341 = vadd.f32 0.0, %v1340
    %v1342 = vpop.f32.mrb[0].mxu0
    %1343 = vdwg.mxu0
    %1344 = vmatprep.subr.mxu0 0.0
    %1345 = vmatpush1.msra.mxu0 %v162
    %1346 = vmatprep.subr.mxu0 0.0
    %1347 = vmatpush1.msra.mxu0 %v163
    %1348 = vmatprep.subr.mxu0 0.0
    %1349 = vmatpush1.msra.mxu0 %v164
    %1350 = vmatprep.subr.mxu0 0.0
    %1351 = vmatpush1.msra.mxu0 %v165
    %1352 = vmatprep.subr.mxu0 0.0
    %1353 = vmatpush1.msra.mxu0 %v166
    %1354 = vmatprep.subr.mxu0 0.0
    %1355 = vmatpush1.msra.mxu0 %v167
    %1356 = vmatprep.subr.mxu0 0.0
    %1357 = vmatpush1.msra.mxu0 %v168
    %1358 = vmatprep.subr.mxu0 0.0
    %1359 = vmatpush1.msra.mxu0 %v169
    %1360 = vmatprep.subr.mxu0 0.0
    %1361 = vmatpush1.msra.mxu0 %v170
    %1362 = vmatprep.subr.mxu0 0.0
    %1363 = vmatpush1.msra.mxu0 %v171
    %1364 = vmatprep.subr.mxu0 0.0
    %1365 = vmatpush1.msra.mxu0 %v172
    %1366 = vmatprep.subr.mxu0 0.0
    %1367 = vmatpush1.msra.mxu0 %v173
    %1368 = vmatprep.subr.mxu0 0.0
    %1369 = vmatpush1.msra.mxu0 %v174
    %1370 = vmatprep.subr.mxu0 0.0
    %1371 = vmatpush1.msra.mxu0 %v175
    %1372 = vmatprep.subr.mxu0 0.0
    %1373 = vmatpush1.msra.mxu0 %v176
    %1374 = vmatprep.subr.mxu0 0.0
    %1375 = vmatpush1.msra.mxu0 %v177
    %1376 = vmatprep.subr.mxu0 0.0
    %1377 = vmatpush1.msra.mxu0 0.0
    %1378 = vmatprep.subr.mxu0 0.0
    %1379 = vmatpush1.msra.mxu0 0.0
    %1380 = vmatprep.subr.mxu0 0.0
    %1381 = vmatpush1.msra.mxu0 0.0
    %1382 = vmatprep.subr.mxu0 0.0
    %1383 = vmatpush1.msra.mxu0 0.0
    %1384 = vmatprep.subr.mxu0 0.0
    %1385 = vmatpush1.msra.mxu0 0.0
    %1386 = vmatprep.subr.mxu0 0.0
    %1387 = vmatpush1.msra.mxu0 0.0
    %1388 = vmatprep.subr.mxu0 0.0
    %1389 = vmatpush1.msra.mxu0 0.0
    %1390 = vmatprep.subr.mxu0 0.0
    %1391 = vmatpush1.msra.mxu0 0.0
    %1392 = vmatprep.subr.mxu0 0.0
    %1393 = vmatpush1.msra.mxu0 0.0
    %1394 = vmatprep.subr.mxu0 0.0
    %1395 = vmatpush1.msra.mxu0 0.0
    %1396 = vmatprep.subr.mxu0 0.0
    %1397 = vmatpush1.msra.mxu0 0.0
    %1398 = vmatprep.subr.mxu0 0.0
    %1399 = vmatpush1.msra.mxu0 0.0
    %1400 = vmatprep.subr.mxu0 0.0
    %1401 = vmatpush1.msra.mxu0 0.0
    %1402 = vmatprep.subr.mxu0 0.0
    %1403 = vmatpush1.msra.mxu0 0.0
    %1404 = vmatprep.subr.mxu0 0.0
    %1405 = vmatpush1.msra.mxu0 0.0
    %1406 = vmatprep.subr.mxu0 0.0
    %1407 = vmatpush1.msra.mxu0 0.0
    %1408 = vmatprep.mubr.f32.mxu0 0.0
    %1409 = vmatmul.mubr.f32.gmra.mrb[0].mxu0 %v853
    %v1410 = vpop.f32.mrb[0].mxu0
    %v1411 = vadd.f32 0.0, %v1410
    %v1412 = vpop.f32.mrb[0].mxu0
    %1413 = vdwg.mxu0
    %1414 = vst [vmem:[#allocation8] sm:$0x1] %v921
    %1415 = vst [vmem:[#allocation8 + $0x1] sm:$0x1] %v991
    %1416 = vst [vmem:[#allocation8 + $0x2] sm:$0x1] %v1061
    %1417 = vst [vmem:[#allocation8 + $0x3] sm:$0x1] %v1131
    %1418 = vst [vmem:[#allocation8 + $0x4] sm:$0x1] %v1201
    %1419 = vst [vmem:[#allocation8 + $0x5] sm:$0x1] %v1271
    %1420 = vst [vmem:[#allocation8 + $0x6] sm:$0x1] %v1341
    %1421 = vst [vmem:[#allocation8 + $0x7] sm:$0x1] %v1411
    %1422 = vst [vmem:[#allocation9] sm:$0x1] %v846
    %1423 = vst [vmem:[#allocation9 + $0x1] sm:$0x1] %v847
    %1424 = vst [vmem:[#allocation9 + $0x2] sm:$0x1] %v848
    %1425 = vst [vmem:[#allocation9 + $0x3] sm:$0x1] %v849
    %1426 = vst [vmem:[#allocation9 + $0x4] sm:$0x1] %v850
    %1427 = vst [vmem:[#allocation9 + $0x5] sm:$0x1] %v851
    %1428 = vst [vmem:[#allocation9 + $0x6] sm:$0x1] %v852
    %1429 = vst [vmem:[#allocation9 + $0x7] sm:$0x1] %v853
    // Predicated region
    $region26: #{tpu_custom_call.1} parent=1 // pred_check
      _
    $region27: #{tpu_custom_call.1} parent=1 // pred_check_branch
      %1431 = sbr.rel (0) target = $region29
    $region28: #{tpu_custom_call.1} parent=1 // pred_region
      %s1433 = ssub.s32 128, 128
      %1434 = vsyncadd [#allocation5], %s1433
      %s1435 = sshll.u32 [#allocation8], 4
      %s1436 = int_to_ptr.vmem [resolvable:$true] %s1435
      %1441 = dma.vmem_to_hbm [thread:$0]  %s1436, 128, %s4, [#allocation5], 16, 16, 1
    $region29: #{tpu_custom_call.1} parent=1 // pred_fallthru
      _
    // Predicated region
    $region30: #{tpu_custom_call.1} parent=1 // pred_check
      _
    $region31: #{tpu_custom_call.1} parent=1 // pred_check_branch
      %1443 = sbr.rel (0) target = $region33
    $region32: #{tpu_custom_call.1} parent=1 // pred_region
      %s1445 = ssub.s32 128, 128
      %1446 = vsyncadd [#allocation10], %s1445
      %s1447 = sshll.u32 [#allocation9], 4
      %s1448 = int_to_ptr.vmem [resolvable:$true] %s1447
      %1453 = dma.vmem_to_hbm [thread:$0]  %s1448, 128, %s5, [#allocation10], 16, 16, 1
    $region33: #{tpu_custom_call.1} parent=1 // pred_fallthru
      _
    // Predicated region
    $region34: #{tpu_custom_call.1} parent=1 // pred_check
      _
    $region35: #{tpu_custom_call.1} parent=1 // pred_check_branch
      %1455 = sbr.rel (0) target = $region37
    $region36: #{tpu_custom_call.1} parent=1 // pred_region
      %1456 = dma.done [#allocation5], 128
    $region37: #{tpu_custom_call.1} parent=1 // pred_fallthru
      _
    // Predicated region
    $region38: #{tpu_custom_call.1} parent=1 // pred_check
      _
    $region39: #{tpu_custom_call.1} parent=1 // pred_check_branch
      %1458 = sbr.rel (0) target = $region41
    $region40: #{tpu_custom_call.1} parent=1 // pred_region
      %1459 = dma.done [#allocation10], 128
    $region41: #{tpu_custom_call.1} parent=1 // pred_fallthru
      _
    %1460 = vsyncpa [#allocation4], 1
    %1461 = vsyncpa [#allocation7], 1
    %1462 = vsyncpa [#allocation5], 1
    %1463 = vsyncpa [#allocation10], 1

</llo_original>
